<compile_context>
chip_gen: v7x
topology: tpu7x:2x2x1
jax: 0.10.0
libtpu: 0.0.40
codegen_flags: <defaults>
</compile_context>

<pallas_src>
import math
import functools

import jax
import jax.numpy as jnp
from jax import lax
from jax.experimental import pallas as pl
from jax.experimental.pallas import tpu as pltpu  # noqa: F401  (kept for TPU-specific tuning hooks)


def _layernorm(x, gamma, beta, eps=1e-5):
    mu = jnp.mean(x, axis=-1, keepdims=True)
    var = jnp.mean((x - mu) ** 2, axis=-1, keepdims=True)
    return (x - mu) * lax.rsqrt(var + eps) * gamma + beta


def _gelu_exact(x):
    # FastGELU = nn.GELU (default, exact erf form).  Kept exact for parity with torch.
    return 0.5 * x * (1.0 + lax.erf(x * (1.0 / math.sqrt(2.0))))


def make_block_kernel(B, N, HID, NH, NS, D, HMLP):
    BN = B * N
    HB = NH * B
    bf16 = jnp.bfloat16
    f32 = jnp.float32

    def kernel(x_ref, wqv_ref, pbias_ref, bmask_ref, phw_ref, mlpw_ref, lnb_ref,
               y_ref, sw_ref, aw_ref):
        x = x_ref[...]                                            # (BN, HID) f32

        lnb = lnb_ref[...]                                        # (7, max(HID,HMLP)) f32
        g1, b1 = lnb[0, :HID], lnb[1, :HID]
        g2, b2 = lnb[2, :HID], lnb[3, :HID]
        bo, bf1, bf2 = lnb[4, :HID], lnb[5, :HMLP], lnb[6, :HID]

        # ---- ln1 (f32 VPU math) ----
        xn = _layernorm(x, g1, b1)
        xn_b = xn.astype(bf16)

        # ---- fused slice-score + V^T projection: ONE MXU matmul over the shared RHS xn ----
        proj = lax.dot_general(wqv_ref[...], xn_b,
                               (((1,), (1,)), ((), ())),
                               preferred_element_type=f32)
        proj = proj + pbias_ref[...]                              # (NH*NS + NH*D, BN)
        scores = proj[:NH * NS].reshape(NH, NS, BN)               # (NH, NS, BN)
        xv_t = proj[NH * NS:].reshape(NH, D, BN)                  # (NH, D,  BN)

        # softmax over slices (torch dim=-2); exact division since sw is a returned output
        scores = scores - jnp.max(scores, axis=1, keepdims=True)
        e = jnp.exp(scores)
        sw = e / jnp.sum(e, axis=1, keepdims=True)                # (NH, NS, BN) f32

        # block-diagonal batch mask turns the per-batch token contraction into one dense
        # head-batched matmul over the fused B*N token axis (no per-batch loop / no relayouts).
        swB = (sw[:, None, :, :] * bmask_ref[...][None, :, None, :]
               ).reshape(NH, B * NS, BN)                          # (NH, B*NS, BN) f32
        swB_b = swB.astype(bf16)

        # ---- slice tokens, batched over heads:  'h r n, h d n -> h r d'  (r = b*NS + m) ----
        slice_token = lax.dot_general(swB_b, xv_t.astype(bf16),
                                      (((2,), (2,)), ((0,), (0,))),
                                      preferred_element_type=f32)  # (NH, B*NS, D)
        slice_norm = jnp.sum(swB, axis=-1, keepdims=True)          # (NH, B*NS, 1)
        slice_token = slice_token * pl.reciprocal(slice_norm + 1e-5, approx=True)

        st_hb = slice_token.reshape(HB, NS, D).astype(bf16)        # hb = h*B + b

        woh = phw_ref[0][..., :HID]                                # (HB, D, HID)  bf16
        qkvp = phw_ref[1][..., :3 * D]                             # (HB, D, 3D)   bf16 (Q pre-scaled)

        # ---- per-(head,batch) qkv projection ----
        qkv_t = lax.dot_general(st_hb, qkvp,
                                (((2,), (1,)), ((0,), (0,))),
                                preferred_element_type=f32)        # (HB, NS, 3D)
        q_t = qkv_t[..., :D]
        k_t = qkv_t[..., D:2 * D]
        v_t = qkv_t[..., 2 * D:]

        # ---- MHA over slice tokens (scale folded into Q) ----
        dots = lax.dot_general(q_t.astype(bf16), k_t.astype(bf16),
                               (((2,), (2,)), ((0,), (0,))),
                               preferred_element_type=f32)         # (HB, NS, NS)
        dots = dots - jnp.max(dots, axis=-1, keepdims=True)
        ea = jnp.exp(dots)
        attn = ea / jnp.sum(ea, axis=-1, keepdims=True)            # (HB, NS, NS) f32

        out_tok = lax.dot_general(attn.astype(bf16), v_t.astype(bf16),
                                  (((2,), (1,)), ((0,), (0,))),
                                  preferred_element_type=f32)      # (HB, NS, D)

        # ---- project slice tokens through per-head W_o slab, scatter back + sum over heads
        #      in ONE flat matmul (masked sw rows zero out the cross-batch terms) ----
        tok_proj = lax.dot_general(out_tok.astype(bf16), woh,
                                   (((2,), (1,)), ((0,), (0,))),
                                   preferred_element_type=f32)     # (HB, NS, HID)
        swB_flat = swB_b.reshape(HB * NS, BN)
        tp_flat = tok_proj.reshape(HB * NS, HID).astype(bf16)
        att_out = lax.dot_general(swB_flat, tp_flat,
                                  (((0,), (0,)), ((), ())),
                                  preferred_element_type=f32)      # (BN, HID)
        att_out = att_out + bo

        x2 = x + att_out

        # ---- MLP branch (Dropout is identity in this deterministic forward) ----
        xn2 = _layernorm(x2, g2, b2)
        h1 = jnp.dot(xn2.astype(bf16), mlpw_ref[0],
                     preferred_element_type=f32) + bf1
        h1 = _gelu_exact(h1)                                       # exact erf GELU, f32
        mlp_out = lax.dot_general(h1.astype(bf16), mlpw_ref[1],
                                  (((1,), (1,)), ((), ())),
                                  preferred_element_type=f32) + bf2

        y_ref[...] = x2 + mlp_out
        sw_ref[...] = sw
        aw_ref[...] = attn

    return kernel


def block_forward(x, params, num_heads, num_slices):
    B, N, HID = x.shape
    NH, NS = num_heads, num_slices
    D = HID // NH
    HMLP = params['w1'].shape[1]
    BN, HB = B * N, NH * B
    scale = D ** (-0.5)
    bf16, f32 = jnp.bfloat16, jnp.float32

    wkv, bkv, wtq = params['wkv'], params['bkv'], params['wtq']

    # ---- fold wtq with the K half of wt_kv_proj; fuse with V^T weight into ONE projection slab ----
    wk = wkv[:, :HID].reshape(HID, NH, D)
    wq_eff = jnp.einsum('hmd,chd->hmc', wtq, wk).reshape(NH * NS, HID)
    wv_t = wkv[:, HID:].T                                              # (NH*D, HID)
    wqv = jnp.concatenate([wq_eff, wv_t], axis=0).astype(bf16)         # (NH*NS + NH*D, HID)
    sbias = jnp.einsum('hmd,hd->hm', wtq, bkv[:HID].reshape(NH, D)).reshape(NH * NS, 1)
    pbias = jnp.concatenate([sbias, bkv[HID:].reshape(NH * D, 1)], axis=0).astype(f32)

    # ---- block-diagonal batch mask over the fused B*N token axis ----
    bmask = jnp.repeat(jnp.eye(B, dtype=f32), N, axis=1)               # (B, B*N)

    # ---- per-(head,batch) weights, hb = h*B + b; 1/sqrt(D) folded into the Q columns ----
    qkvp = params['qkvp']
    qkvp_s = jnp.concatenate([qkvp[..., :D] * scale, qkvp[..., D:]], axis=-1)
    qkvp_hb = jnp.repeat(qkvp_s, B, axis=0)                            # (HB, D, 3D)
    woh_hb = jnp.repeat(params['wo'].reshape(NH, D, HID), B, axis=0)   # (HB, D, HID)
    PW = max(HID, 3 * D)
    phw = jnp.zeros((2, HB, D, PW), bf16)
    phw = phw.at[0, :, :, :HID].set(woh_hb.astype(bf16))
    phw = phw.at[1, :, :, :3 * D].set(qkvp_hb.astype(bf16))

    mlpw = jnp.stack([params['w1'], params['w2'].T]).astype(bf16)      # (2, HID, HMLP)

    W = max(HID, HMLP)
    pad = lambda v: jnp.pad(v, (0, W - v.shape[0]))
    lnb = jnp.stack([pad(params['g1']), pad(params['b1']),
                     pad(params['g2']), pad(params['b2']),
                     pad(params['bo']), pad(params['bf1']),
                     pad(params['bf2'])]).astype(f32)                  # (7, W)

    kernel = make_block_kernel(B, N, HID, NH, NS, D, HMLP)

    # Gridless single invocation: whole arrays live in VMEM, no per-batch pipeline steps.
    y2d, sw_raw, aw_raw = pl.pallas_call(
        kernel,
        out_shape=(
            jax.ShapeDtypeStruct((BN, HID), f32),       # y (B folded into rows)
            jax.ShapeDtypeStruct((NH, NS, BN), f32),    # slice_weights (head-major, fused token axis)
            jax.ShapeDtypeStruct((HB, NS, NS), f32),    # attn_weights  (hb = h*B + b)
        ),
    )(x.reshape(BN, HID), wqv, pbias, bmask, phw, mlpw, lnb)

    # output layout plumbing (outside the kernel)
    y = y2d.reshape(B, N, HID)
    slice_weights = sw_raw.reshape(NH, NS, B, N).transpose(2, 0, 1, 3)   # (B, NH, NS, N)
    attn_weights = aw_raw.reshape(NH, B, NS, NS).transpose(1, 0, 2, 3)   # (B, NH, NS, NS)

    temperature = jnp.float32(1.0)
    bias = params['wtq_bias'][..., None]   # (NH, NS, 1) zeros buffer, returned unchanged
    # TODO(synk): dropout layers are identity in this deterministic forward (no RNG dropout applied).
    return y, slice_weights, temperature, bias, attn_weights


def block_reference(x, params, NH, NS):
    """Pure-JAX f32 reference of the PyTorch Block forward (for an in-script sanity check)."""
    B, N, HID = x.shape
    D = HID // NH

    def ln(v, g, b, eps=1e-5):
        mu = v.mean(-1, keepdims=True)
        var = ((v - mu) ** 2).mean(-1, keepdims=True)
        return (v - mu) / jnp.sqrt(var + eps) * g + b

    xn = ln(x, params['g1'], params['b1'])
    kv = xn @ params['wkv'] + params['bkv']
    xk = kv[..., :HID].reshape(B, N, NH, D).transpose(0, 2, 1, 3)
    xv = kv[..., HID:].reshape(B, N, NH, D).transpose(0, 2, 1, 3)
    scores = jnp.einsum('hmd,bhnd->bhmn', params['wtq'], xk)
    sw = jax.nn.softmax(scores, axis=-2)
    st = jnp.einsum('bhmn,bhnd->bhmd', sw, xv)
    st = st / (sw.sum(-1, keepdims=True) + 1e-5)
    qkv = jnp.einsum('bhmd,hde->bhme', st, params['qkvp'])
    q, k, v = qkv[..., :D], qkv[..., D:2 * D], qkv[..., 2 * D:]
    dots = jnp.einsum('bhqd,bhkd->bhqk', q, k) * (D ** (-0.5))
    attn = jax.nn.softmax(dots, axis=-1)
    out_tok = jnp.einsum('bhqk,bhkd->bhqd', attn, v)
    out = jnp.einsum('bhmd,bhmn->bhnd', out_tok, sw)
    out = out.transpose(0, 2, 1, 3).reshape(B, N, HID)
    x2 = x + (out @ params['wo'] + params['bo'])
    xn2 = ln(x2, params['g2'], params['b2'])
    h = _gelu_exact(xn2 @ params['w1'] + params['bf1'])
    y = x2 + (h @ params['w2'] + params['bf2'])
    return y, sw, attn


if __name__ == "__main__":
    key = jax.random.PRNGKey(0)
    B, N, HID = 2, 16, 32          # batch, seq, hidden_dim
    NH, NS = 4, 8                  # num_heads, num_slices
    mlp_ratio = 2
    D = HID // NH
    HMLP = int(HID * mlp_ratio)
    std = 0.02

    keys = jax.random.split(key, 8)
    params = {
        # LayerNorm params (PyTorch default init: weight=1, bias=0)
        'g1': jnp.ones((HID,), jnp.float32),
        'b1': jnp.zeros((HID,), jnp.float32),
        'g2': jnp.ones((HID,), jnp.float32),
        'b2': jnp.zeros((HID,), jnp.float32),
        # wt_kv_proj: Linear(HID, 2*HID)  (stored as (in, out) for x @ W)
        'wkv': jax.random.normal(keys[0], (HID, 2 * HID), jnp.float32) * std,
        'bkv': jnp.zeros((2 * HID,), jnp.float32),
        # wtq: (num_heads, num_slices, head_dim), trunc_normal std=0.02 ~ normal*0.02
        'wtq': jax.random.normal(keys[1], (NH, NS, D), jnp.float32) * std,
        # qkv_proj: (num_heads, head_dim, 3*head_dim)
        'qkvp': jax.random.normal(keys[2], (NH, D, 3 * D), jnp.float32) * std,
        # to_out Linear(HID, HID)
        'wo': jax.random.normal(keys[3], (HID, HID), jnp.float32) * std,
        'bo': jnp.zeros((HID,), jnp.float32),
        # MLP fc1 / fc2 (act defaults to gelu)
        'w1': jax.random.normal(keys[4], (HID, HMLP), jnp.float32) * std,
        'bf1': jnp.zeros((HMLP,), jnp.float32),
        'w2': jax.random.normal(keys[5], (HMLP, HID), jnp.float32) * std,
        'bf2': jnp.zeros((HID,), jnp.float32),
        # registered buffer wtq_bias (zeros) — only returned (as `bias`), not used in compute
        'wtq_bias': jnp.zeros((NH, NS), jnp.float32),
    }

    x = jax.random.normal(keys[6], (B, N, HID), jnp.float32)

    fwd = jax.jit(block_forward, static_argnums=(2, 3))
    outs = fwd(x, params, NH, NS)
    jax.block_until_ready(outs)

    y, slice_weights, temperature, bias, attn_weights = outs
    assert y.shape == (B, N, HID)
    assert slice_weights.shape == (B, NH, NS, N)
    assert attn_weights.shape == (B, NH, NS, NS)
    assert bias.shape == (NH, NS, 1)
    assert bool(jnp.isfinite(y).all())

    # Loose-tolerance sanity check vs. a pure-JAX f32 reference (bf16 MXU operands + approx recip).
    y_ref, sw_ref, aw_ref = block_reference(x, params, NH, NS)
    assert bool(jnp.allclose(y, y_ref, atol=5e-2, rtol=0.0))
    assert bool(jnp.allclose(slice_weights, sw_ref, atol=2e-2, rtol=0.0))
    assert bool(jnp.allclose(attn_weights, aw_ref, atol=2e-2, rtol=0.0))

    print("KERNEL_OK")
</pallas_src>

<mosaic_0001>
module attributes {stable_mosaic.version = 11 : i64} {
  func.func @kernel(%arg0: memref<32x32xf32, #tpu.memory_space<vmem>>, %arg1: memref<64x32xbf16, #tpu.memory_space<vmem>>, %arg2: memref<64x1xf32, #tpu.memory_space<vmem>>, %arg3: memref<2x32xf32, #tpu.memory_space<vmem>>, %arg4: memref<2x8x8x32xbf16, #tpu.memory_space<vmem>>, %arg5: memref<2x32x64xbf16, #tpu.memory_space<vmem>>, %arg6: memref<7x64xf32, #tpu.memory_space<vmem>>, %arg7: memref<32x32xf32, #tpu.memory_space<vmem>>, %arg8: memref<4x8x32xf32, #tpu.memory_space<vmem>>, %arg9: memref<8x8x8xf32, #tpu.memory_space<vmem>>) attributes {dimension_semantics = [], scalar_prefetch = 0 : i64, scratch_operands = 0 : i64, tpu.core_type = #tpu.core_type<tc>} {
    %c0 = arith.constant 0 : index
    %c0_0 = arith.constant 0 : index
    %0 = vector.load %arg0[%c0, %c0_0] : memref<32x32xf32, #tpu.memory_space<vmem>>, vector<32x32xf32>
    %c0_1 = arith.constant 0 : index
    %c0_2 = arith.constant 0 : index
    %1 = vector.load %arg6[%c0_1, %c0_2] : memref<7x64xf32, #tpu.memory_space<vmem>>, vector<7x64xf32>
    %2 = vector.extract_strided_slice %1 {offsets = [0, 0], sizes = [1, 32], strides = [1, 1]} : vector<7x64xf32> to vector<1x32xf32>
    %3 = vector.shape_cast %2 : vector<1x32xf32> to vector<32xf32>
    %4 = vector.extract_strided_slice %1 {offsets = [1, 0], sizes = [1, 32], strides = [1, 1]} : vector<7x64xf32> to vector<1x32xf32>
    %5 = vector.shape_cast %4 : vector<1x32xf32> to vector<32xf32>
    %6 = vector.extract_strided_slice %1 {offsets = [2, 0], sizes = [1, 32], strides = [1, 1]} : vector<7x64xf32> to vector<1x32xf32>
    %7 = vector.shape_cast %6 : vector<1x32xf32> to vector<32xf32>
    %8 = vector.extract_strided_slice %1 {offsets = [3, 0], sizes = [1, 32], strides = [1, 1]} : vector<7x64xf32> to vector<1x32xf32>
    %9 = vector.shape_cast %8 : vector<1x32xf32> to vector<32xf32>
    %10 = vector.extract_strided_slice %1 {offsets = [4, 0], sizes = [1, 32], strides = [1, 1]} : vector<7x64xf32> to vector<1x32xf32>
    %11 = vector.shape_cast %10 : vector<1x32xf32> to vector<32xf32>
    %12 = vector.extract_strided_slice %1 {offsets = [5, 0], sizes = [1, 64], strides = [1, 1]} : vector<7x64xf32> to vector<1x64xf32>
    %13 = vector.shape_cast %12 : vector<1x64xf32> to vector<64xf32>
    %14 = vector.extract_strided_slice %1 {offsets = [6, 0], sizes = [1, 32], strides = [1, 1]} : vector<7x64xf32> to vector<1x32xf32>
    %15 = vector.shape_cast %14 : vector<1x32xf32> to vector<32xf32>
    %cst = arith.constant dense<0.000000e+00> : vector<32xf32>
    %16 = vector.multi_reduction <add>, %0, %cst [1] : vector<32x32xf32> to vector<32xf32>
    %17 = vector.shape_cast %16 : vector<32xf32> to vector<32x1xf32>
    %cst_3 = arith.constant 3.200000e+01 : f32
    %18 = vector.broadcast %cst_3 : f32 to vector<32x1xf32>
    %19 = arith.divf %17, %18 : vector<32x1xf32>
    %20 = vector.broadcast %19 : vector<32x1xf32> to vector<32x32xf32>
    %21 = arith.subf %0, %20 : vector<32x32xf32>
    %22 = arith.mulf %21, %21 : vector<32x32xf32>
    %cst_4 = arith.constant dense<0.000000e+00> : vector<32xf32>
    %23 = vector.multi_reduction <add>, %22, %cst_4 [1] : vector<32x32xf32> to vector<32xf32>
    %24 = vector.shape_cast %23 : vector<32xf32> to vector<32x1xf32>
    %cst_5 = arith.constant 3.200000e+01 : f32
    %25 = vector.broadcast %cst_5 : f32 to vector<32x1xf32>
    %26 = arith.divf %24, %25 : vector<32x1xf32>
    %27 = vector.broadcast %19 : vector<32x1xf32> to vector<32x32xf32>
    %28 = arith.subf %0, %27 : vector<32x32xf32>
    %cst_6 = arith.constant 9.99999974E-6 : f32
    %29 = vector.broadcast %cst_6 : f32 to vector<32x1xf32>
    %30 = arith.addf %26, %29 : vector<32x1xf32>
    %31 = math.rsqrt %30 : vector<32x1xf32>
    %32 = vector.broadcast %31 : vector<32x1xf32> to vector<32x32xf32>
    %33 = arith.mulf %28, %32 : vector<32x32xf32>
    %34 = vector.shape_cast %3 : vector<32xf32> to vector<1x32xf32>
    %35 = vector.broadcast %34 : vector<1x32xf32> to vector<32x32xf32>
    %36 = arith.mulf %33, %35 : vector<32x32xf32>
    %37 = vector.shape_cast %5 : vector<32xf32> to vector<1x32xf32>
    %38 = vector.broadcast %37 : vector<1x32xf32> to vector<32x32xf32>
    %39 = arith.addf %36, %38 : vector<32x32xf32>
    %40 = arith.truncf %39 : vector<32x32xf32> to vector<32x32xbf16>
    %c0_7 = arith.constant 0 : index
    %c0_8 = arith.constant 0 : index
    %41 = vector.load %arg1[%c0_7, %c0_8] : memref<64x32xbf16, #tpu.memory_space<vmem>>, vector<64x32xbf16>
    %cst_9 = arith.constant dense<0.000000e+00> : vector<64x32xf32>
    %42 = tpu.matmul %41, %40, %cst_9 {dimension_numbers = #tpu.dot_dimension_numbers<[1], [1], [0], [0], [0, 0, 1, 0], [], []>} : vector<64x32xbf16>, vector<32x32xbf16>, vector<64x32xf32> -> vector<64x32xf32>
    %c0_10 = arith.constant 0 : index
    %c0_11 = arith.constant 0 : index
    %43 = vector.load %arg2[%c0_10, %c0_11] : memref<64x1xf32, #tpu.memory_space<vmem>>, vector<64x1xf32>
    %44 = vector.broadcast %43 : vector<64x1xf32> to vector<64x32xf32>
    %45 = arith.addf %42, %44 : vector<64x32xf32>
    %46 = vector.extract_strided_slice %45 {offsets = [0, 0], sizes = [32, 32], strides = [1, 1]} : vector<64x32xf32> to vector<32x32xf32>
    %47 = vector.shape_cast %46 : vector<32x32xf32> to vector<4x8x32xf32>
    %48 = vector.extract_strided_slice %45 {offsets = [32, 0], sizes = [32, 32], strides = [1, 1]} : vector<64x32xf32> to vector<32x32xf32>
    %49 = vector.shape_cast %48 : vector<32x32xf32> to vector<4x8x32xf32>
    %cst_12 = arith.constant dense<0xFF800000> : vector<4x32xf32>
    %50 = vector.multi_reduction <maximumf>, %47, %cst_12 [1] : vector<4x8x32xf32> to vector<4x32xf32>
    %51 = vector.shape_cast %50 : vector<4x32xf32> to vector<4x1x32xf32>
    %52 = vector.broadcast %51 : vector<4x1x32xf32> to vector<4x8x32xf32>
    %53 = arith.subf %47, %52 : vector<4x8x32xf32>
    %54 = math.exp %53 : vector<4x8x32xf32>
    %cst_13 = arith.constant dense<0.000000e+00> : vector<4x32xf32>
    %55 = vector.multi_reduction <add>, %54, %cst_13 [1] : vector<4x8x32xf32> to vector<4x32xf32>
    %56 = vector.shape_cast %55 : vector<4x32xf32> to vector<4x1x32xf32>
    %57 = vector.broadcast %56 : vector<4x1x32xf32> to vector<4x8x32xf32>
    %58 = arith.divf %54, %57 : vector<4x8x32xf32>
    %59 = vector.shape_cast %58 : vector<4x8x32xf32> to vector<4x1x8x32xf32>
    %c0_14 = arith.constant 0 : index
    %c0_15 = arith.constant 0 : index
    %60 = vector.load %arg3[%c0_14, %c0_15] : memref<2x32xf32, #tpu.memory_space<vmem>>, vector<2x32xf32>
    %61 = vector.shape_cast %60 : vector<2x32xf32> to vector<1x2x1x32xf32>
    %62 = vector.broadcast %59 : vector<4x1x8x32xf32> to vector<4x2x8x32xf32>
    %63 = vector.broadcast %61 : vector<1x2x1x32xf32> to vector<4x2x8x32xf32>
    %64 = arith.mulf %62, %63 : vector<4x2x8x32xf32>
    %65 = vector.shape_cast %64 : vector<4x2x8x32xf32> to vector<4x16x32xf32>
    %66 = arith.truncf %65 : vector<4x16x32xf32> to vector<4x16x32xbf16>
    %67 = arith.truncf %49 : vector<4x8x32xf32> to vector<4x8x32xbf16>
    %cst_16 = arith.constant dense<0.000000e+00> : vector<4x16x8xf32>
    %68 = tpu.matmul %66, %67, %cst_16 {dimension_numbers = #tpu.dot_dimension_numbers<[2], [2], [1], [1], [0, 0, 0, 1, 1, 1], [0], [0]>} : vector<4x16x32xbf16>, vector<4x8x32xbf16>, vector<4x16x8xf32> -> vector<4x16x8xf32>
    %cst_17 = arith.constant dense<0.000000e+00> : vector<4x16xf32>
    %69 = vector.multi_reduction <add>, %65, %cst_17 [2] : vector<4x16x32xf32> to vector<4x16xf32>
    %70 = vector.shape_cast %69 : vector<4x16xf32> to vector<4x16x1xf32>
    %cst_18 = arith.constant 9.99999974E-6 : f32
    %71 = vector.broadcast %cst_18 : f32 to vector<4x16x1xf32>
    %72 = arith.addf %70, %71 : vector<4x16x1xf32>
    %73 = tpu.reciprocal %72 {approx = true} : vector<4x16x1xf32> -> vector<4x16x1xf32>
    %74 = vector.broadcast %73 : vector<4x16x1xf32> to vector<4x16x8xf32>
    %75 = arith.mulf %68, %74 : vector<4x16x8xf32>
    %76 = vector.shape_cast %75 : vector<4x16x8xf32> to vector<8x8x8xf32>
    %77 = arith.truncf %76 : vector<8x8x8xf32> to vector<8x8x8xbf16>
    %c0_19 = arith.constant 0 : index
    %c0_20 = arith.constant 0 : index
    %c0_21 = arith.constant 0 : index
    %c0_22 = arith.constant 0 : index
    %78 = vector.load %arg4[%c0_19, %c0_20, %c0_21, %c0_22] : memref<2x8x8x32xbf16, #tpu.memory_space<vmem>>, vector<1x8x8x32xbf16>
    %79 = vector.shape_cast %78 : vector<1x8x8x32xbf16> to vector<8x8x32xbf16>
    %c1 = arith.constant 1 : index
    %c0_23 = arith.constant 0 : index
    %c0_24 = arith.constant 0 : index
    %c0_25 = arith.constant 0 : index
    %80 = vector.load %arg4[%c1, %c0_23, %c0_24, %c0_25] : memref<2x8x8x32xbf16, #tpu.memory_space<vmem>>, vector<1x8x8x32xbf16>
    %81 = vector.shape_cast %80 : vector<1x8x8x32xbf16> to vector<8x8x32xbf16>
    %82 = vector.extract_strided_slice %81 {offsets = [0, 0, 0], sizes = [8, 8, 24], strides = [1, 1, 1]} : vector<8x8x32xbf16> to vector<8x8x24xbf16>
    %cst_26 = arith.constant dense<0.000000e+00> : vector<8x8x24xf32>
    %83 = tpu.matmul %77, %82, %cst_26 {dimension_numbers = #tpu.dot_dimension_numbers<[2], [1], [1], [2], [0, 0, 0, 1, 1, 2], [0], [0]>} : vector<8x8x8xbf16>, vector<8x8x24xbf16>, vector<8x8x24xf32> -> vector<8x8x24xf32>
    %84 = vector.extract_strided_slice %83 {offsets = [0, 0, 0], sizes = [8, 8, 8], strides = [1, 1, 1]} : vector<8x8x24xf32> to vector<8x8x8xf32>
    %85 = vector.extract_strided_slice %83 {offsets = [0, 0, 8], sizes = [8, 8, 8], strides = [1, 1, 1]} : vector<8x8x24xf32> to vector<8x8x8xf32>
    %86 = vector.extract_strided_slice %83 {offsets = [0, 0, 16], sizes = [8, 8, 8], strides = [1, 1, 1]} : vector<8x8x24xf32> to vector<8x8x8xf32>
    %87 = arith.truncf %84 : vector<8x8x8xf32> to vector<8x8x8xbf16>
    %88 = arith.truncf %85 : vector<8x8x8xf32> to vector<8x8x8xbf16>
    %cst_27 = arith.constant dense<0.000000e+00> : vector<8x8x8xf32>
    %89 = tpu.matmul %87, %88, %cst_27 {dimension_numbers = #tpu.dot_dimension_numbers<[2], [2], [1], [1], [0, 0, 0, 1, 1, 1], [0], [0]>} : vector<8x8x8xbf16>, vector<8x8x8xbf16>, vector<8x8x8xf32> -> vector<8x8x8xf32>
    %cst_28 = arith.constant dense<0xFF800000> : vector<8x8xf32>
    %90 = vector.multi_reduction <maximumf>, %89, %cst_28 [2] : vector<8x8x8xf32> to vector<8x8xf32>
    %91 = vector.shape_cast %90 : vector<8x8xf32> to vector<8x8x1xf32>
    %92 = vector.broadcast %91 : vector<8x8x1xf32> to vector<8x8x8xf32>
    %93 = arith.subf %89, %92 : vector<8x8x8xf32>
    %94 = math.exp %93 : vector<8x8x8xf32>
    %cst_29 = arith.constant dense<0.000000e+00> : vector<8x8xf32>
    %95 = vector.multi_reduction <add>, %94, %cst_29 [2] : vector<8x8x8xf32> to vector<8x8xf32>
    %96 = vector.shape_cast %95 : vector<8x8xf32> to vector<8x8x1xf32>
    %97 = vector.broadcast %96 : vector<8x8x1xf32> to vector<8x8x8xf32>
    %98 = arith.divf %94, %97 : vector<8x8x8xf32>
    %99 = arith.truncf %98 : vector<8x8x8xf32> to vector<8x8x8xbf16>
    %100 = arith.truncf %86 : vector<8x8x8xf32> to vector<8x8x8xbf16>
    %cst_30 = arith.constant dense<0.000000e+00> : vector<8x8x8xf32>
    %101 = tpu.matmul %99, %100, %cst_30 {dimension_numbers = #tpu.dot_dimension_numbers<[2], [1], [1], [2], [0, 0, 0, 1, 1, 2], [0], [0]>} : vector<8x8x8xbf16>, vector<8x8x8xbf16>, vector<8x8x8xf32> -> vector<8x8x8xf32>
    %102 = arith.truncf %101 : vector<8x8x8xf32> to vector<8x8x8xbf16>
    %cst_31 = arith.constant dense<0.000000e+00> : vector<8x8x32xf32>
    %103 = tpu.matmul %102, %79, %cst_31 {dimension_numbers = #tpu.dot_dimension_numbers<[2], [1], [1], [2], [0, 0, 0, 1, 1, 2], [0], [0]>} : vector<8x8x8xbf16>, vector<8x8x32xbf16>, vector<8x8x32xf32> -> vector<8x8x32xf32>
    %104 = vector.shape_cast %66 : vector<4x16x32xbf16> to vector<64x32xbf16>
    %105 = vector.shape_cast %103 : vector<8x8x32xf32> to vector<64x32xf32>
    %106 = arith.truncf %105 : vector<64x32xf32> to vector<64x32xbf16>
    %cst_32 = arith.constant dense<0.000000e+00> : vector<32x32xf32>
    %107 = tpu.matmul %104, %106, %cst_32 {dimension_numbers = #tpu.dot_dimension_numbers<[0], [0], [1], [1], [0, 1, 1, 1], [], []>} : vector<64x32xbf16>, vector<64x32xbf16>, vector<32x32xf32> -> vector<32x32xf32>
    %108 = vector.shape_cast %11 : vector<32xf32> to vector<1x32xf32>
    %109 = vector.broadcast %108 : vector<1x32xf32> to vector<32x32xf32>
    %110 = arith.addf %107, %109 : vector<32x32xf32>
    %111 = arith.addf %0, %110 : vector<32x32xf32>
    %cst_33 = arith.constant dense<0.000000e+00> : vector<32xf32>
    %112 = vector.multi_reduction <add>, %111, %cst_33 [1] : vector<32x32xf32> to vector<32xf32>
    %113 = vector.shape_cast %112 : vector<32xf32> to vector<32x1xf32>
    %cst_34 = arith.constant 3.200000e+01 : f32
    %114 = vector.broadcast %cst_34 : f32 to vector<32x1xf32>
    %115 = arith.divf %113, %114 : vector<32x1xf32>
    %116 = vector.broadcast %115 : vector<32x1xf32> to vector<32x32xf32>
    %117 = arith.subf %111, %116 : vector<32x32xf32>
    %118 = arith.mulf %117, %117 : vector<32x32xf32>
    %cst_35 = arith.constant dense<0.000000e+00> : vector<32xf32>
    %119 = vector.multi_reduction <add>, %118, %cst_35 [1] : vector<32x32xf32> to vector<32xf32>
    %120 = vector.shape_cast %119 : vector<32xf32> to vector<32x1xf32>
    %cst_36 = arith.constant 3.200000e+01 : f32
    %121 = vector.broadcast %cst_36 : f32 to vector<32x1xf32>
    %122 = arith.divf %120, %121 : vector<32x1xf32>
    %123 = vector.broadcast %115 : vector<32x1xf32> to vector<32x32xf32>
    %124 = arith.subf %111, %123 : vector<32x32xf32>
    %cst_37 = arith.constant 9.99999974E-6 : f32
    %125 = vector.broadcast %cst_37 : f32 to vector<32x1xf32>
    %126 = arith.addf %122, %125 : vector<32x1xf32>
    %127 = math.rsqrt %126 : vector<32x1xf32>
    %128 = vector.broadcast %127 : vector<32x1xf32> to vector<32x32xf32>
    %129 = arith.mulf %124, %128 : vector<32x32xf32>
    %130 = vector.shape_cast %7 : vector<32xf32> to vector<1x32xf32>
    %131 = vector.broadcast %130 : vector<1x32xf32> to vector<32x32xf32>
    %132 = arith.mulf %129, %131 : vector<32x32xf32>
    %133 = vector.shape_cast %9 : vector<32xf32> to vector<1x32xf32>
    %134 = vector.broadcast %133 : vector<1x32xf32> to vector<32x32xf32>
    %135 = arith.addf %132, %134 : vector<32x32xf32>
    %136 = arith.truncf %135 : vector<32x32xf32> to vector<32x32xbf16>
    %c0_38 = arith.constant 0 : index
    %c0_39 = arith.constant 0 : index
    %c0_40 = arith.constant 0 : index
    %137 = vector.load %arg5[%c0_38, %c0_39, %c0_40] : memref<2x32x64xbf16, #tpu.memory_space<vmem>>, vector<1x32x64xbf16>
    %138 = vector.shape_cast %137 : vector<1x32x64xbf16> to vector<32x64xbf16>
    %cst_41 = arith.constant dense<0.000000e+00> : vector<32x64xf32>
    %139 = tpu.matmul %136, %138, %cst_41 {dimension_numbers = #tpu.dot_dimension_numbers<[1], [0], [0], [1], [0, 0, 1, 1], [], []>} : vector<32x32xbf16>, vector<32x64xbf16>, vector<32x64xf32> -> vector<32x64xf32>
    %140 = vector.shape_cast %13 : vector<64xf32> to vector<1x64xf32>
    %141 = vector.broadcast %140 : vector<1x64xf32> to vector<32x64xf32>
    %142 = arith.addf %139, %141 : vector<32x64xf32>
    %cst_42 = arith.constant 5.000000e-01 : f32
    %143 = vector.broadcast %cst_42 : f32 to vector<32x64xf32>
    %144 = arith.mulf %143, %142 : vector<32x64xf32>
    %cst_43 = arith.constant 0.707106769 : f32
    %145 = vector.broadcast %cst_43 : f32 to vector<32x64xf32>
    %146 = arith.mulf %142, %145 : vector<32x64xf32>
    %147 = math.erf %146 : vector<32x64xf32>
    %cst_44 = arith.constant 1.000000e+00 : f32
    %148 = vector.broadcast %cst_44 : f32 to vector<32x64xf32>
    %149 = arith.addf %148, %147 : vector<32x64xf32>
    %150 = arith.mulf %144, %149 : vector<32x64xf32>
    %151 = arith.truncf %150 : vector<32x64xf32> to vector<32x64xbf16>
    %c1_45 = arith.constant 1 : index
    %c0_46 = arith.constant 0 : index
    %c0_47 = arith.constant 0 : index
    %152 = vector.load %arg5[%c1_45, %c0_46, %c0_47] : memref<2x32x64xbf16, #tpu.memory_space<vmem>>, vector<1x32x64xbf16>
    %153 = vector.shape_cast %152 : vector<1x32x64xbf16> to vector<32x64xbf16>
    %cst_48 = arith.constant dense<0.000000e+00> : vector<32x32xf32>
    %154 = tpu.matmul %151, %153, %cst_48 {dimension_numbers = #tpu.dot_dimension_numbers<[1], [1], [0], [0], [0, 0, 1, 0], [], []>} : vector<32x64xbf16>, vector<32x64xbf16>, vector<32x32xf32> -> vector<32x32xf32>
    %155 = vector.shape_cast %15 : vector<32xf32> to vector<1x32xf32>
    %156 = vector.broadcast %155 : vector<1x32xf32> to vector<32x32xf32>
    %157 = arith.addf %154, %156 : vector<32x32xf32>
    %158 = arith.addf %111, %157 : vector<32x32xf32>
    %c0_49 = arith.constant 0 : index
    %c0_50 = arith.constant 0 : index
    %159 = vector.load %arg7[%c0_49, %c0_50] : memref<32x32xf32, #tpu.memory_space<vmem>>, vector<32x32xf32>
    tpu.vector_store %arg7[%c0_49, %c0_50], %158 {strides = array<i32>} : memref<32x32xf32, #tpu.memory_space<vmem>>, vector<32x32xf32>,
    %c0_51 = arith.constant 0 : index
    %c0_52 = arith.constant 0 : index
    %c0_53 = arith.constant 0 : index
    %160 = vector.load %arg8[%c0_51, %c0_52, %c0_53] : memref<4x8x32xf32, #tpu.memory_space<vmem>>, vector<4x8x32xf32>
    tpu.vector_store %arg8[%c0_51, %c0_52, %c0_53], %58 {strides = array<i32>} : memref<4x8x32xf32, #tpu.memory_space<vmem>>, vector<4x8x32xf32>,
    %c0_54 = arith.constant 0 : index
    %c0_55 = arith.constant 0 : index
    %c0_56 = arith.constant 0 : index
    %161 = vector.load %arg9[%c0_54, %c0_55, %c0_56] : memref<8x8x8xf32, #tpu.memory_space<vmem>>, vector<8x8x8xf32>
    tpu.vector_store %arg9[%c0_54, %c0_55, %c0_56], %98 {strides = array<i32>} : memref<8x8x8xf32, #tpu.memory_space<vmem>>, vector<8x8x8xf32>,
    return
  }
}

</mosaic_0001>

<llo_original>
// kernel: block_forward.1
$region0: #{block_forward.1}
  #allocation0 [shape = 'u32[]', space=smem, size = 0x4, offset = 0x4, fixed_abs, tag = 'smem constant byte address 0x4 - core index']
  #allocation1 [shape = 'u32[144,128]{1,0:T(1,128)}', space=vmem, size = 0x12000, scoped, tag = 'internal scratch']
  %s0 = inlined_call_operand.vmem [shape: f32[32,32], index: 0, kind: input, shape index: {}]
  %s1 = inlined_call_operand.vmem [shape: bf16[64,32], index: 1, kind: input, shape index: {}]
  %s2 = inlined_call_operand.vmem [shape: f32[64,1], index: 2, kind: input, shape index: {}]
  %s3 = inlined_call_operand.vmem [shape: f32[2,32], index: 3, kind: input, shape index: {}]
  %s4 = inlined_call_operand.vmem [shape: bf16[2,8,8,32], index: 4, kind: input, shape index: {}]
  %s5 = inlined_call_operand.vmem [shape: bf16[2,32,64], index: 5, kind: input, shape index: {}]
  %s6 = inlined_call_operand.vmem [shape: f32[7,64], index: 6, kind: input, shape index: {}]
  %s7 = inlined_call_operand.hbm [shape: f32[32,32], index: 7, kind: output, shape index: {0}]
  %s8 = inlined_call_operand.vmem [shape: f32[4,8,32], index: 8, kind: output, shape index: {1}]
  %s9 = inlined_call_operand.vmem [shape: f32[8,8,8], index: 9, kind: output, shape index: {2}]
  %10 = xla_tuple %s7, %s8, %s9
  %s11 = sld [smem:[#allocation0]]
  $region54: #{block_forward.1} parent=0
    _
  %s13 = ssub.s32 1, %s11
  %s14 = scalar_select 0, %s13, %s11
  $region1: #{block_forward.1} parent=0
    #allocation2 [shape = 'u8[16384]{0}', space=vmem, size = 0x4000, scoped, tag = 'output window, operand 0, single buffered']
    #allocation3 [shape = 's32[1]{0}', space=sflag, size = 0x4, scoped, tag = 'scoped memory for block_forward.1']
    %15 = vsyncpa [#allocation3], 0
    // Predicated region
    $region2: #{block_forward.1} parent=1 // pred_check
      _
    $region3: #{block_forward.1} parent=1 // pred_check_branch
      %17 = sbr.rel (0) target = $region5
    $region4: #{block_forward.1} parent=1 // pred_region
      _
    $region5: #{block_forward.1} parent=1 // pred_fallthru
      _
    // Predicated region
    $region6: #{block_forward.1} parent=1 // pred_check
      _
    $region7: #{block_forward.1} parent=1 // pred_check_branch
      %19 = sbr.rel (0) target = $region9
    $region8: #{block_forward.1} parent=1 // pred_region
      _
    $region9: #{block_forward.1} parent=1 // pred_fallthru
      _
    // Predicated region
    $region10: #{block_forward.1} parent=1 // pred_check
      _
    $region11: #{block_forward.1} parent=1 // pred_check_branch
      %21 = sbr.rel (0) target = $region13
    $region12: #{block_forward.1} parent=1 // pred_region
      _
    $region13: #{block_forward.1} parent=1 // pred_fallthru
      _
    // Predicated region
    $region14: #{block_forward.1} parent=1 // pred_check
      _
    $region15: #{block_forward.1} parent=1 // pred_check_branch
      %23 = sbr.rel (0) target = $region17
    $region16: #{block_forward.1} parent=1 // pred_region
      _
    $region17: #{block_forward.1} parent=1 // pred_fallthru
      _
    // Predicated region
    $region18: #{block_forward.1} parent=1 // pred_check
      _
    $region19: #{block_forward.1} parent=1 // pred_check_branch
      %25 = sbr.rel (0) target = $region21
    $region20: #{block_forward.1} parent=1 // pred_region
      _
    $region21: #{block_forward.1} parent=1 // pred_fallthru
      _
    // Predicated region
    $region22: #{block_forward.1} parent=1 // pred_check
      _
    $region23: #{block_forward.1} parent=1 // pred_check_branch
      %27 = sbr.rel (0) target = $region25
    $region24: #{block_forward.1} parent=1 // pred_region
      _
    $region25: #{block_forward.1} parent=1 // pred_fallthru
      _
    // Predicated region
    $region26: #{block_forward.1} parent=1 // pred_check
      _
    $region27: #{block_forward.1} parent=1 // pred_check_branch
      %29 = sbr.rel (0) target = $region29
    $region28: #{block_forward.1} parent=1 // pred_region
      _
    $region29: #{block_forward.1} parent=1 // pred_fallthru
      _
    %v31 = vld [vmem:[%s0] sm:$0xff]
    %v32 = vld [vmem:[%s0 + $0x8] sm:$0xff]
    %v33 = vld [vmem:[%s0 + $0x10] sm:$0xff]
    %v34 = vld [vmem:[%s0 + $0x18] sm:$0xff]
    %v35 = vld [vmem:[%s6] sm:$0x7f]
    %vm36 = vcmask 261120
    %v37 = vsel %vm36, %v31, 0.0
    %38 = vadd.xlane.f32.xlu0 %v37
    %v39 = vpop.xlane.xlu0 %38
    %v40 = vsel %vm36, %v32, 0.0
    %41 = vadd.xlane.f32.xlu0 %v40
    %v42 = vpop.xlane.xlu0 %41
    %v43 = vsel %vm36, %v33, 0.0
    %44 = vadd.xlane.f32.xlu0 %v43
    %v45 = vpop.xlane.xlu0 %44
    %v46 = vsel %vm36, %v34, 0.0
    %47 = vadd.xlane.f32.xlu0 %v46
    %v48 = vpop.xlane.xlu0 %47
    %v49 = vrcp.pop 32.0
    %v50 = vmul.f32 %v39, %v49
    %v51 = vmul.f32 %v42, %v49
    %v52 = vmul.f32 %v45, %v49
    %v53 = vmul.f32 %v48, %v49
    %v54 = vsub.f32 %v31, %v50
    %v55 = vsub.f32 %v32, %v51
    %v56 = vsub.f32 %v33, %v52
    %v57 = vsub.f32 %v34, %v53
    %v58 = vmul.f32 %v54, %v54
    %v59 = vmul.f32 %v55, %v55
    %v60 = vmul.f32 %v56, %v56
    %v61 = vmul.f32 %v57, %v57
    %v62 = vsel %vm36, %v58, 0.0
    %63 = vadd.xlane.f32.xlu0 %v62
    %v64 = vpop.xlane.xlu0 %63
    %v65 = vsel %vm36, %v59, 0.0
    %66 = vadd.xlane.f32.xlu0 %v65
    %v67 = vpop.xlane.xlu0 %66
    %v68 = vsel %vm36, %v60, 0.0
    %69 = vadd.xlane.f32.xlu0 %v68
    %v70 = vpop.xlane.xlu0 %69
    %v71 = vsel %vm36, %v61, 0.0
    %72 = vadd.xlane.f32.xlu0 %v71
    %v73 = vpop.xlane.xlu0 %72
    %v74 = vmul.f32 %v64, %v49
    %v75 = vmul.f32 %v67, %v49
    %v76 = vmul.f32 %v70, %v49
    %v77 = vmul.f32 %v73, %v49
    %v78 = vadd.f32 %v74, 1e-05
    %v79 = vadd.f32 %v75, 1e-05
    %v80 = vadd.f32 %v76, 1e-05
    %v81 = vadd.f32 %v77, 1e-05
    %v82 = vrsqrt.pop %v78
    %v83 = vrsqrt.pop %v79
    %v84 = vrsqrt.pop %v80
    %v85 = vrsqrt.pop %v81
    %v86 = vmul.f32 %v54, %v82
    %v87 = vmul.f32 %v55, %v83
    %v88 = vmul.f32 %v56, %v84
    %v89 = vmul.f32 %v57, %v85
    %v90 = vlaneseq
    %v91 = vshrl.u32 %v90, 7
    %v92 = vsub.s32 0, %v91
    %v93 = vrot.slane %v35, %v92
    %v94 = vmul.f32 %v86, %v93
    %v95 = vmul.f32 %v87, %v93
    %v96 = vmul.f32 %v88, %v93
    %v97 = vmul.f32 %v89, %v93
    %v98 = vlaneseq
    %v99 = vshrl.u32 %v98, 7
    %v100 = vsub.s32 1, %v99
    %v101 = vrot.slane %v35, %v100
    %v102 = vadd.f32 %v94, %v101
    %v103 = vadd.f32 %v95, %v101
    %v104 = vadd.f32 %v96, %v101
    %v105 = vadd.f32 %v97, %v101
    %v106 = vpack.c.bf16 %v103, %v102
    %v107 = vpack.c.bf16 %v105, %v104
    %v108 = vld [vmem:[%s1] sm:$0xf]
    %v109 = vld [vmem:[%s1 + $0x4] sm:$0xf]
    %v110 = vld [vmem:[%s1 + $0x8] sm:$0xf]
    %v111 = vld [vmem:[%s1 + $0xc] sm:$0xf]
    %v112 = vld [vmem:[%s1 + $0x10] sm:$0xf]
    %v113 = vld [vmem:[%s1 + $0x14] sm:$0xf]
    %v114 = vld [vmem:[%s1 + $0x18] sm:$0xf]
    %v115 = vld [vmem:[%s1 + $0x1c] sm:$0xf]
    %v116 = vld [vmem:[%s2] sm:$0xff]
    %v117 = vld [vmem:[%s2 + $0x8] sm:$0xff]
    %v118 = vld [vmem:[%s2 + $0x10] sm:$0xff]
    %v119 = vld [vmem:[%s2 + $0x18] sm:$0xff]
    %v120 = vld [vmem:[%s2 + $0x20] sm:$0xff]
    %v121 = vld [vmem:[%s2 + $0x28] sm:$0xff]
    %v122 = vld [vmem:[%s2 + $0x30] sm:$0xff]
    %v123 = vld [vmem:[%s2 + $0x38] sm:$0xff]
    %125 = vset.pattern.permute.xlu0 0
    %126 = vperm.xlu0 %125, %v116
    %v127 = vpop.permute.xlu0 %126
    %130 = vset.pattern.permute.xlu0 0
    %131 = vperm.xlu0 %130, %v117
    %v132 = vpop.permute.xlu0 %131
    %135 = vset.pattern.permute.xlu0 0
    %136 = vperm.xlu0 %135, %v118
    %v137 = vpop.permute.xlu0 %136
    %140 = vset.pattern.permute.xlu0 0
    %141 = vperm.xlu0 %140, %v119
    %v142 = vpop.permute.xlu0 %141
    %145 = vset.pattern.permute.xlu0 0
    %146 = vperm.xlu0 %145, %v120
    %v147 = vpop.permute.xlu0 %146
    %150 = vset.pattern.permute.xlu0 0
    %151 = vperm.xlu0 %150, %v121
    %v152 = vpop.permute.xlu0 %151
    %155 = vset.pattern.permute.xlu0 0
    %156 = vperm.xlu0 %155, %v122
    %v157 = vpop.permute.xlu0 %156
    %160 = vset.pattern.permute.xlu0 0
    %161 = vperm.xlu0 %160, %v123
    %v162 = vpop.permute.xlu0 %161
    %v172 = vunpack.c.l.b16 %v108
    %v173 = vunpack.c.l.b16 %v109
    %v174 = vunpack.c.l.b16 %v110
    %v175 = vunpack.c.l.b16 %v111
    %v176 = vunpack.c.l.b16 %v112
    %v177 = vunpack.c.l.b16 %v113
    %v178 = vunpack.c.l.b16 %v114
    %v179 = vunpack.c.l.b16 %v115
    %v180 = vpack.c.b16 %v173, %v172
    %v181 = vpack.c.b16 %v175, %v174
    %v182 = vpack.c.b16 %v177, %v176
    %v183 = vpack.c.b16 %v179, %v178
    %v185 = vsel %vm36, %v180, 0
    %v188 = vsel %vm36, %v181, 0
    %v191 = vsel %vm36, %v182, 0
    %v194 = vsel %vm36, %v183, 0
    %v197 = vsel %vm36, %v106, 0
    %v200 = vsel %vm36, %v107, 0
    %202 = vmatprep.subr.bf16.mxu0 0
    %203 = vmatpush1.bf16.xpose.msra.mxu0 %v197
    %204 = vmatprep.subr.bf16.mxu0 0
    %205 = vmatpush1.bf16.xpose.msra.mxu0 %v200
    %206 = vmatprep.subr.bf16.mxu0 0
    %207 = vmatpush1.bf16.xpose.msra.mxu0 0
    %208 = vmatprep.subr.bf16.mxu0 0
    %209 = vmatpush1.bf16.xpose.msra.mxu0 0
    %210 = vmatprep.subr.bf16.mxu0 0
    %211 = vmatpush1.bf16.xpose.msra.mxu0 0
    %212 = vmatprep.subr.bf16.mxu0 0
    %213 = vmatpush1.bf16.xpose.msra.mxu0 0
    %214 = vmatprep.subr.bf16.mxu0 0
    %215 = vmatpush1.bf16.xpose.msra.mxu0 0
    %216 = vmatprep.subr.bf16.mxu0 0
    %217 = vmatpush1.bf16.xpose.msra.mxu0 0
    %218 = vmatprep.subr.bf16.mxu0 0
    %219 = vmatpush1.bf16.xpose.msra.mxu0 0
    %220 = vmatprep.subr.bf16.mxu0 0
    %221 = vmatpush1.bf16.xpose.msra.mxu0 0
    %222 = vmatprep.subr.bf16.mxu0 0
    %223 = vmatpush1.bf16.xpose.msra.mxu0 0
    %224 = vmatprep.subr.bf16.mxu0 0
    %225 = vmatpush1.bf16.xpose.msra.mxu0 0
    %226 = vmatprep.subr.bf16.mxu0 0
    %227 = vmatpush1.bf16.xpose.msra.mxu0 0
    %228 = vmatprep.subr.bf16.mxu0 0
    %229 = vmatpush1.bf16.xpose.msra.mxu0 0
    %230 = vmatprep.subr.bf16.mxu0 0
    %231 = vmatpush1.bf16.xpose.msra.mxu0 0
    %232 = vmatprep.subr.bf16.mxu0 0
    %233 = vmatpush1.bf16.xpose.msra.mxu0 0
    %234 = vmatprep.mubr.bf16.mxu0 0
    %235 = vmatmul.mubr.bf16.gmra.mrb[0].mxu0 %v185
    %v236 = vpop.f32.mrb[0].mxu0
    %v237 = vadd.f32 %v127, %v236
    %v238 = vpop.f32.mrb[0].mxu0
    %v239 = vpop.f32.mrb[0].mxu0
    %v240 = vadd.f32 %v132, %v239
    %v241 = vpop.f32.mrb[0].mxu0
    %242 = vmatprep.mubr.bf16.mxu0 0
    %243 = vmatmul.mubr.bf16.gmra.mrb[0].mxu0 %v188
    %v244 = vpop.f32.mrb[0].mxu0
    %v245 = vadd.f32 %v137, %v244
    %v246 = vpop.f32.mrb[0].mxu0
    %v247 = vpop.f32.mrb[0].mxu0
    %v248 = vadd.f32 %v142, %v247
    %v249 = vpop.f32.mrb[0].mxu0
    %250 = vmatprep.mubr.bf16.mxu0 0
    %251 = vmatmul.mubr.bf16.gmra.mrb[0].mxu0 %v191
    %v252 = vpop.f32.mrb[0].mxu0
    %v253 = vadd.f32 %v147, %v252
    %v254 = vpop.f32.mrb[0].mxu0
    %v255 = vpop.f32.mrb[0].mxu0
    %v256 = vadd.f32 %v152, %v255
    %v257 = vpop.f32.mrb[0].mxu0
    %258 = vmatprep.mubr.bf16.mxu0 0
    %259 = vmatmul.mubr.bf16.gmra.mrb[0].mxu0 %v194
    %v260 = vpop.f32.mrb[0].mxu0
    %v261 = vadd.f32 %v157, %v260
    %v262 = vpop.f32.mrb[0].mxu0
    %v263 = vpop.f32.mrb[0].mxu0
    %v264 = vadd.f32 %v162, %v263
    %v265 = vpop.f32.mrb[0].mxu0
    %266 = vdwg.mxu0
    %v267 = vsel %vm36, %v237, -inf
    %v268 = vrot.slane %v267, 4
    %v269 = vmax.f32 %v267, %v268
    %v270 = vrot.slane %v269, 2
    %v271 = vmax.f32 %v269, %v270
    %v272 = vrot.slane %v271, 1
    %v273 = vmax.f32 %v271, %v272
    %v274 = vsel %vm36, %v240, -inf
    %v275 = vrot.slane %v274, 4
    %v276 = vmax.f32 %v274, %v275
    %v277 = vrot.slane %v276, 2
    %v278 = vmax.f32 %v276, %v277
    %v279 = vrot.slane %v278, 1
    %v280 = vmax.f32 %v278, %v279
    %v281 = vsel %vm36, %v245, -inf
    %v282 = vrot.slane %v281, 4
    %v283 = vmax.f32 %v281, %v282
    %v284 = vrot.slane %v283, 2
    %v285 = vmax.f32 %v283, %v284
    %v286 = vrot.slane %v285, 1
    %v287 = vmax.f32 %v285, %v286
    %v288 = vsel %vm36, %v248, -inf
    %v289 = vrot.slane %v288, 4
    %v290 = vmax.f32 %v288, %v289
    %v291 = vrot.slane %v290, 2
    %v292 = vmax.f32 %v290, %v291
    %v293 = vrot.slane %v292, 1
    %v294 = vmax.f32 %v292, %v293
    %v295 = vsub.f32 %v237, %v273
    %v296 = vsub.f32 %v240, %v280
    %v297 = vsub.f32 %v245, %v287
    %v298 = vsub.f32 %v248, %v294
    %v299 = vmul.f32 %v295, 1.442695
    %v300 = vpow.pop %v299
    %v301 = vmul.f32 %v296, 1.442695
    %v302 = vpow.pop %v301
    %v303 = vmul.f32 %v297, 1.442695
    %v304 = vpow.pop %v303
    %v305 = vmul.f32 %v298, 1.442695
    %v306 = vpow.pop %v305
    %v307 = vsel %vm36, %v300, 0.0
    %v308 = vrot.slane %v307, 4
    %v309 = vadd.f32 %v307, %v308
    %v310 = vrot.slane %v309, 2
    %v311 = vadd.f32 %v309, %v310
    %v312 = vrot.slane %v311, 1
    %v313 = vadd.f32 %v311, %v312
    %v314 = vsel %vm36, %v302, 0.0
    %v315 = vrot.slane %v314, 4
    %v316 = vadd.f32 %v314, %v315
    %v317 = vrot.slane %v316, 2
    %v318 = vadd.f32 %v316, %v317
    %v319 = vrot.slane %v318, 1
    %v320 = vadd.f32 %v318, %v319
    %v321 = vsel %vm36, %v304, 0.0
    %v322 = vrot.slane %v321, 4
    %v323 = vadd.f32 %v321, %v322
    %v324 = vrot.slane %v323, 2
    %v325 = vadd.f32 %v323, %v324
    %v326 = vrot.slane %v325, 1
    %v327 = vadd.f32 %v325, %v326
    %v328 = vsel %vm36, %v306, 0.0
    %v329 = vrot.slane %v328, 4
    %v330 = vadd.f32 %v328, %v329
    %v331 = vrot.slane %v330, 2
    %v332 = vadd.f32 %v330, %v331
    %v333 = vrot.slane %v332, 1
    %v334 = vadd.f32 %v332, %v333
    %v335 = vrcp.pop %v313
    %v336 = vmul.f32 %v300, %v335
    %v337 = vrcp.pop %v320
    %v338 = vmul.f32 %v302, %v337
    %v339 = vrcp.pop %v327
    %v340 = vmul.f32 %v304, %v339
    %v341 = vrcp.pop %v334
    %v342 = vmul.f32 %v306, %v341
    %v343 = vld [vmem:[%s3] sm:$0x3]
    %v346 = vunpack.c.l.s4 1966171168
    %v347 = vunpack.c.0.s8 %v346
    %v348 = vlaneseq
    %v349 = vshrl.u32 %v348, 7
    %v350 = vsub.s32 %v347, %v349
    %v351 = vrot.slane %v343, %v350
    %v352 = vcombine.high %v351, %v351
    %v354 = vunpack.c.l.s4 1966171168
    %v355 = vunpack.c.0.s8 %v354
    %v356 = vlaneseq
    %v357 = vshrl.u32 %v356, 7
    %v358 = vsub.s32 %v355, %v357
    %v359 = vrot.slane %v351, %v358
    %v361 = vunpack.c.l.s4 1966171168
    %v362 = vunpack.c.0.s8 %v361
    %v363 = vlaneseq
    %v364 = vshrl.u32 %v363, 7
    %v365 = vsub.s32 %v362, %v364
    %v366 = vrot.slane %v352, %v365
    %v367 = vlaneseq
    %v368 = vshrl.u32 %v367, 7
    %v369 = vsub.s32 0, %v368
    %v370 = vrot.slane %v359, %v369
    %v371 = vlaneseq
    %v372 = vshrl.u32 %v371, 7
    %v373 = vsub.s32 0, %v372
    %v374 = vrot.slane %v366, %v373
    %v377 = vmul.f32 %v336, %v370
    %v378 = vmul.f32 %v336, %v374
    %v379 = vmul.f32 %v338, %v370
    %v380 = vmul.f32 %v338, %v374
    %v381 = vmul.f32 %v340, %v370
    %v382 = vmul.f32 %v340, %v374
    %v383 = vmul.f32 %v342, %v370
    %v384 = vmul.f32 %v342, %v374
    %v385 = vpack.c.bf16 %v378, %v377
    %v386 = vpack.c.bf16 %v380, %v379
    %v387 = vpack.c.bf16 %v382, %v381
    %v388 = vpack.c.bf16 %v384, %v383
    %v389 = vpack.c.bf16 %v253, %v253
    %v390 = vpack.c.bf16 %v256, %v256
    %v391 = vpack.c.bf16 %v261, %v261
    %v392 = vpack.c.bf16 %v264, %v264
    %v394 = vsel %vm36, %v385, 0
    %v397 = vsel %vm36, %v389, 0
    %399 = vmatprep.subr.bf16.mxu0 0
    %400 = vmatpush1.bf16.xpose.msra.mxu0 %v397
    %401 = vmatprep.subr.bf16.mxu0 0
    %402 = vmatpush1.bf16.xpose.msra.mxu0 0
    %403 = vmatprep.subr.bf16.mxu0 0
    %404 = vmatpush1.bf16.xpose.msra.mxu0 0
    %405 = vmatprep.subr.bf16.mxu0 0
    %406 = vmatpush1.bf16.xpose.msra.mxu0 0
    %407 = vmatprep.subr.bf16.mxu0 0
    %408 = vmatpush1.bf16.xpose.msra.mxu0 0
    %409 = vmatprep.subr.bf16.mxu0 0
    %410 = vmatpush1.bf16.xpose.msra.mxu0 0
    %411 = vmatprep.subr.bf16.mxu0 0
    %412 = vmatpush1.bf16.xpose.msra.mxu0 0
    %413 = vmatprep.subr.bf16.mxu0 0
    %414 = vmatpush1.bf16.xpose.msra.mxu0 0
    %415 = vmatprep.subr.bf16.mxu0 0
    %416 = vmatpush1.bf16.xpose.msra.mxu0 0
    %417 = vmatprep.subr.bf16.mxu0 0
    %418 = vmatpush1.bf16.xpose.msra.mxu0 0
    %419 = vmatprep.subr.bf16.mxu0 0
    %420 = vmatpush1.bf16.xpose.msra.mxu0 0
    %421 = vmatprep.subr.bf16.mxu0 0
    %422 = vmatpush1.bf16.xpose.msra.mxu0 0
    %423 = vmatprep.subr.bf16.mxu0 0
    %424 = vmatpush1.bf16.xpose.msra.mxu0 0
    %425 = vmatprep.subr.bf16.mxu0 0
    %426 = vmatpush1.bf16.xpose.msra.mxu0 0
    %427 = vmatprep.subr.bf16.mxu0 0
    %428 = vmatpush1.bf16.xpose.msra.mxu0 0
    %429 = vmatprep.subr.bf16.mxu0 0
    %430 = vmatpush1.bf16.xpose.msra.mxu0 0
    %431 = vmatprep.mubr.bf16.mxu0 0
    %432 = vmatmul.mubr.bf16.gmra.mrb[0].mxu0 %v394
    %v433 = vpop.f32.mrb[0].mxu0
    %v434 = vadd.f32 0.0, %v433
    %v435 = vpop.f32.mrb[0].mxu0
    %v436 = vpop.f32.mrb[0].mxu0
    %v437 = vadd.f32 0.0, %v436
    %v438 = vpop.f32.mrb[0].mxu0
    %439 = vdwg.mxu0
    %v441 = vsel %vm36, %v386, 0
    %v444 = vsel %vm36, %v390, 0
    %446 = vmatprep.subr.bf16.mxu0 0
    %447 = vmatpush1.bf16.xpose.msra.mxu0 %v444
    %448 = vmatprep.subr.bf16.mxu0 0
    %449 = vmatpush1.bf16.xpose.msra.mxu0 0
    %450 = vmatprep.subr.bf16.mxu0 0
    %451 = vmatpush1.bf16.xpose.msra.mxu0 0
    %452 = vmatprep.subr.bf16.mxu0 0
    %453 = vmatpush1.bf16.xpose.msra.mxu0 0
    %454 = vmatprep.subr.bf16.mxu0 0
    %455 = vmatpush1.bf16.xpose.msra.mxu0 0
    %456 = vmatprep.subr.bf16.mxu0 0
    %457 = vmatpush1.bf16.xpose.msra.mxu0 0
    %458 = vmatprep.subr.bf16.mxu0 0
    %459 = vmatpush1.bf16.xpose.msra.mxu0 0
    %460 = vmatprep.subr.bf16.mxu0 0
    %461 = vmatpush1.bf16.xpose.msra.mxu0 0
    %462 = vmatprep.subr.bf16.mxu0 0
    %463 = vmatpush1.bf16.xpose.msra.mxu0 0
    %464 = vmatprep.subr.bf16.mxu0 0
    %465 = vmatpush1.bf16.xpose.msra.mxu0 0
    %466 = vmatprep.subr.bf16.mxu0 0
    %467 = vmatpush1.bf16.xpose.msra.mxu0 0
    %468 = vmatprep.subr.bf16.mxu0 0
    %469 = vmatpush1.bf16.xpose.msra.mxu0 0
    %470 = vmatprep.subr.bf16.mxu0 0
    %471 = vmatpush1.bf16.xpose.msra.mxu0 0
    %472 = vmatprep.subr.bf16.mxu0 0
    %473 = vmatpush1.bf16.xpose.msra.mxu0 0
    %474 = vmatprep.subr.bf16.mxu0 0
    %475 = vmatpush1.bf16.xpose.msra.mxu0 0
    %476 = vmatprep.subr.bf16.mxu0 0
    %477 = vmatpush1.bf16.xpose.msra.mxu0 0
    %478 = vmatprep.mubr.bf16.mxu0 0
    %479 = vmatmul.mubr.bf16.gmra.mrb[0].mxu0 %v441
    %v480 = vpop.f32.mrb[0].mxu0
    %v481 = vadd.f32 0.0, %v480
    %v482 = vpop.f32.mrb[0].mxu0
    %v483 = vpop.f32.mrb[0].mxu0
    %v484 = vadd.f32 0.0, %v483
    %v485 = vpop.f32.mrb[0].mxu0
    %486 = vdwg.mxu0
    %v488 = vsel %vm36, %v387, 0
    %v491 = vsel %vm36, %v391, 0
    %493 = vmatprep.subr.bf16.mxu0 0
    %494 = vmatpush1.bf16.xpose.msra.mxu0 %v491
    %495 = vmatprep.subr.bf16.mxu0 0
    %496 = vmatpush1.bf16.xpose.msra.mxu0 0
    %497 = vmatprep.subr.bf16.mxu0 0
    %498 = vmatpush1.bf16.xpose.msra.mxu0 0
    %499 = vmatprep.subr.bf16.mxu0 0
    %500 = vmatpush1.bf16.xpose.msra.mxu0 0
    %501 = vmatprep.subr.bf16.mxu0 0
    %502 = vmatpush1.bf16.xpose.msra.mxu0 0
    %503 = vmatprep.subr.bf16.mxu0 0
    %504 = vmatpush1.bf16.xpose.msra.mxu0 0
    %505 = vmatprep.subr.bf16.mxu0 0
    %506 = vmatpush1.bf16.xpose.msra.mxu0 0
    %507 = vmatprep.subr.bf16.mxu0 0
    %508 = vmatpush1.bf16.xpose.msra.mxu0 0
    %509 = vmatprep.subr.bf16.mxu0 0
    %510 = vmatpush1.bf16.xpose.msra.mxu0 0
    %511 = vmatprep.subr.bf16.mxu0 0
    %512 = vmatpush1.bf16.xpose.msra.mxu0 0
    %513 = vmatprep.subr.bf16.mxu0 0
    %514 = vmatpush1.bf16.xpose.msra.mxu0 0
    %515 = vmatprep.subr.bf16.mxu0 0
    %516 = vmatpush1.bf16.xpose.msra.mxu0 0
    %517 = vmatprep.subr.bf16.mxu0 0
    %518 = vmatpush1.bf16.xpose.msra.mxu0 0
    %519 = vmatprep.subr.bf16.mxu0 0
    %520 = vmatpush1.bf16.xpose.msra.mxu0 0
    %521 = vmatprep.subr.bf16.mxu0 0
    %522 = vmatpush1.bf16.xpose.msra.mxu0 0
    %523 = vmatprep.subr.bf16.mxu0 0
    %524 = vmatpush1.bf16.xpose.msra.mxu0 0
    %525 = vmatprep.mubr.bf16.mxu0 0
    %526 = vmatmul.mubr.bf16.gmra.mrb[0].mxu0 %v488
    %v527 = vpop.f32.mrb[0].mxu0
    %v528 = vadd.f32 0.0, %v527
    %v529 = vpop.f32.mrb[0].mxu0
    %v530 = vpop.f32.mrb[0].mxu0
    %v531 = vadd.f32 0.0, %v530
    %v532 = vpop.f32.mrb[0].mxu0
    %533 = vdwg.mxu0
    %v535 = vsel %vm36, %v388, 0
    %v538 = vsel %vm36, %v392, 0
    %540 = vmatprep.subr.bf16.mxu0 0
    %541 = vmatpush1.bf16.xpose.msra.mxu0 %v538
    %542 = vmatprep.subr.bf16.mxu0 0
    %543 = vmatpush1.bf16.xpose.msra.mxu0 0
    %544 = vmatprep.subr.bf16.mxu0 0
    %545 = vmatpush1.bf16.xpose.msra.mxu0 0
    %546 = vmatprep.subr.bf16.mxu0 0
    %547 = vmatpush1.bf16.xpose.msra.mxu0 0
    %548 = vmatprep.subr.bf16.mxu0 0
    %549 = vmatpush1.bf16.xpose.msra.mxu0 0
    %550 = vmatprep.subr.bf16.mxu0 0
    %551 = vmatpush1.bf16.xpose.msra.mxu0 0
    %552 = vmatprep.subr.bf16.mxu0 0
    %553 = vmatpush1.bf16.xpose.msra.mxu0 0
    %554 = vmatprep.subr.bf16.mxu0 0
    %555 = vmatpush1.bf16.xpose.msra.mxu0 0
    %556 = vmatprep.subr.bf16.mxu0 0
    %557 = vmatpush1.bf16.xpose.msra.mxu0 0
    %558 = vmatprep.subr.bf16.mxu0 0
    %559 = vmatpush1.bf16.xpose.msra.mxu0 0
    %560 = vmatprep.subr.bf16.mxu0 0
    %561 = vmatpush1.bf16.xpose.msra.mxu0 0
    %562 = vmatprep.subr.bf16.mxu0 0
    %563 = vmatpush1.bf16.xpose.msra.mxu0 0
    %564 = vmatprep.subr.bf16.mxu0 0
    %565 = vmatpush1.bf16.xpose.msra.mxu0 0
    %566 = vmatprep.subr.bf16.mxu0 0
    %567 = vmatpush1.bf16.xpose.msra.mxu0 0
    %568 = vmatprep.subr.bf16.mxu0 0
    %569 = vmatpush1.bf16.xpose.msra.mxu0 0
    %570 = vmatprep.subr.bf16.mxu0 0
    %571 = vmatpush1.bf16.xpose.msra.mxu0 0
    %572 = vmatprep.mubr.bf16.mxu0 0
    %573 = vmatmul.mubr.bf16.gmra.mrb[0].mxu0 %v535
    %v574 = vpop.f32.mrb[0].mxu0
    %v575 = vadd.f32 0.0, %v574
    %v576 = vpop.f32.mrb[0].mxu0
    %v577 = vpop.f32.mrb[0].mxu0
    %v578 = vadd.f32 0.0, %v577
    %v579 = vpop.f32.mrb[0].mxu0
    %580 = vdwg.mxu0
    %v581 = vsel %vm36, %v377, 0.0
    %582 = vadd.xlane.f32.xlu0 %v581
    %v583 = vpop.xlane.xlu0 %582
    %v584 = vsel %vm36, %v378, 0.0
    %585 = vadd.xlane.f32.xlu0 %v584
    %v586 = vpop.xlane.xlu0 %585
    %v587 = vsel %vm36, %v379, 0.0
    %588 = vadd.xlane.f32.xlu0 %v587
    %v589 = vpop.xlane.xlu0 %588
    %v590 = vsel %vm36, %v380, 0.0
    %591 = vadd.xlane.f32.xlu0 %v590
    %v592 = vpop.xlane.xlu0 %591
    %v593 = vsel %vm36, %v381, 0.0
    %594 = vadd.xlane.f32.xlu0 %v593
    %v595 = vpop.xlane.xlu0 %594
    %v596 = vsel %vm36, %v382, 0.0
    %597 = vadd.xlane.f32.xlu0 %v596
    %v598 = vpop.xlane.xlu0 %597
    %v599 = vsel %vm36, %v383, 0.0
    %600 = vadd.xlane.f32.xlu0 %v599
    %v601 = vpop.xlane.xlu0 %600
    %v602 = vsel %vm36, %v384, 0.0
    %603 = vadd.xlane.f32.xlu0 %v602
    %v604 = vpop.xlane.xlu0 %603
    %v605 = vadd.f32 %v583, 1e-05
    %v606 = vadd.f32 %v586, 1e-05
    %v607 = vadd.f32 %v589, 1e-05
    %v608 = vadd.f32 %v592, 1e-05
    %v609 = vadd.f32 %v595, 1e-05
    %v610 = vadd.f32 %v598, 1e-05
    %v611 = vadd.f32 %v601, 1e-05
    %v612 = vadd.f32 %v604, 1e-05
    %v613 = vrcp.pop %v605
    %v614 = vrcp.pop %v606
    %v615 = vrcp.pop %v607
    %v616 = vrcp.pop %v608
    %v617 = vrcp.pop %v609
    %v618 = vrcp.pop %v610
    %v619 = vrcp.pop %v611
    %v620 = vrcp.pop %v612
    %v621 = vmul.f32 %v434, %v613
    %v622 = vmul.f32 %v437, %v614
    %v623 = vmul.f32 %v481, %v615
    %v624 = vmul.f32 %v484, %v616
    %v625 = vmul.f32 %v528, %v617
    %v626 = vmul.f32 %v531, %v618
    %v627 = vmul.f32 %v575, %v619
    %v628 = vmul.f32 %v578, %v620
    %v629 = vpack.c.bf16 %v621, %v621
    %v630 = vpack.c.bf16 %v622, %v622
    %v631 = vpack.c.bf16 %v623, %v623
    %v632 = vpack.c.bf16 %v624, %v624
    %v633 = vpack.c.bf16 %v625, %v625
    %v634 = vpack.c.bf16 %v626, %v626
    %v635 = vpack.c.bf16 %v627, %v627
    %v636 = vpack.c.bf16 %v628, %v628
    %v637 = vld [vmem:[%s4] sm:$0xf]
    %v638 = vld [vmem:[%s4 + $0x4] sm:$0xf]
    %v639 = vld [vmem:[%s4 + $0x8] sm:$0xf]
    %v640 = vld [vmem:[%s4 + $0xc] sm:$0xf]
    %v641 = vld [vmem:[%s4 + $0x10] sm:$0xf]
    %v642 = vld [vmem:[%s4 + $0x14] sm:$0xf]
    %v643 = vld [vmem:[%s4 + $0x18] sm:$0xf]
    %v644 = vld [vmem:[%s4 + $0x1c] sm:$0xf]
    %s645 = scalar_lea.vmem %s4, 32
    %v646 = vld [vmem:[%s645] sm:$0xf]
    %v647 = vld [vmem:[%s645 + $0x4] sm:$0xf]
    %v648 = vld [vmem:[%s645 + $0x8] sm:$0xf]
    %v649 = vld [vmem:[%s645 + $0xc] sm:$0xf]
    %v650 = vld [vmem:[%s645 + $0x10] sm:$0xf]
    %v651 = vld [vmem:[%s645 + $0x14] sm:$0xf]
    %v652 = vld [vmem:[%s645 + $0x18] sm:$0xf]
    %v653 = vld [vmem:[%s645 + $0x1c] sm:$0xf]
    %vm654 = vcmask 64512
    %v656 = vsel %vm654, %v629, 0
    %vm658 = vcmask 1043456
    %v660 = vsel %vm658, %v646, 0
    %662 = vmatprep.subr.bf16.mxu0 0
    %663 = vmatpush1.bf16.msra.mxu0 %v660
    %664 = vmatprep.subr.bf16.mxu0 0
    %665 = vmatpush1.bf16.msra.mxu0 0
    %666 = vmatprep.subr.bf16.mxu0 0
    %667 = vmatpush1.bf16.msra.mxu0 0
    %668 = vmatprep.subr.bf16.mxu0 0
    %669 = vmatpush1.bf16.msra.mxu0 0
    %670 = vmatprep.subr.bf16.mxu0 0
    %671 = vmatpush1.bf16.msra.mxu0 0
    %672 = vmatprep.subr.bf16.mxu0 0
    %673 = vmatpush1.bf16.msra.mxu0 0
    %674 = vmatprep.subr.bf16.mxu0 0
    %675 = vmatpush1.bf16.msra.mxu0 0
    %676 = vmatprep.subr.bf16.mxu0 0
    %677 = vmatpush1.bf16.msra.mxu0 0
    %678 = vmatprep.subr.bf16.mxu0 0
    %679 = vmatpush1.bf16.msra.mxu0 0
    %680 = vmatprep.subr.bf16.mxu0 0
    %681 = vmatpush1.bf16.msra.mxu0 0
    %682 = vmatprep.subr.bf16.mxu0 0
    %683 = vmatpush1.bf16.msra.mxu0 0
    %684 = vmatprep.subr.bf16.mxu0 0
    %685 = vmatpush1.bf16.msra.mxu0 0
    %686 = vmatprep.subr.bf16.mxu0 0
    %687 = vmatpush1.bf16.msra.mxu0 0
    %688 = vmatprep.subr.bf16.mxu0 0
    %689 = vmatpush1.bf16.msra.mxu0 0
    %690 = vmatprep.subr.bf16.mxu0 0
    %691 = vmatpush1.bf16.msra.mxu0 0
    %692 = vmatprep.subr.bf16.mxu0 0
    %693 = vmatpush1.bf16.msra.mxu0 0
    %694 = vmatprep.mubr.bf16.mxu0 0
    %695 = vmatmul.mubr.bf16.gmra.mrb[0].mxu0 %v656
    %v696 = vpop.f32.mrb[0].mxu0
    %v697 = vadd.f32 0.0, %v696
    %v698 = vpop.f32.mrb[0].mxu0
    %v699 = vpop.f32.mrb[0].mxu0
    %v700 = vpop.f32.mrb[0].mxu0
    %701 = vdwg.mxu0
    %v703 = vsel %vm654, %v630, 0
    %v706 = vsel %vm658, %v647, 0
    %708 = vmatprep.subr.bf16.mxu0 0
    %709 = vmatpush1.bf16.msra.mxu0 %v706
    %710 = vmatprep.subr.bf16.mxu0 0
    %711 = vmatpush1.bf16.msra.mxu0 0
    %712 = vmatprep.subr.bf16.mxu0 0
    %713 = vmatpush1.bf16.msra.mxu0 0
    %714 = vmatprep.subr.bf16.mxu0 0
    %715 = vmatpush1.bf16.msra.mxu0 0
    %716 = vmatprep.subr.bf16.mxu0 0
    %717 = vmatpush1.bf16.msra.mxu0 0
    %718 = vmatprep.subr.bf16.mxu0 0
    %719 = vmatpush1.bf16.msra.mxu0 0
    %720 = vmatprep.subr.bf16.mxu0 0
    %721 = vmatpush1.bf16.msra.mxu0 0
    %722 = vmatprep.subr.bf16.mxu0 0
    %723 = vmatpush1.bf16.msra.mxu0 0
    %724 = vmatprep.subr.bf16.mxu0 0
    %725 = vmatpush1.bf16.msra.mxu0 0
    %726 = vmatprep.subr.bf16.mxu0 0
    %727 = vmatpush1.bf16.msra.mxu0 0
    %728 = vmatprep.subr.bf16.mxu0 0
    %729 = vmatpush1.bf16.msra.mxu0 0
    %730 = vmatprep.subr.bf16.mxu0 0
    %731 = vmatpush1.bf16.msra.mxu0 0
    %732 = vmatprep.subr.bf16.mxu0 0
    %733 = vmatpush1.bf16.msra.mxu0 0
    %734 = vmatprep.subr.bf16.mxu0 0
    %735 = vmatpush1.bf16.msra.mxu0 0
    %736 = vmatprep.subr.bf16.mxu0 0
    %737 = vmatpush1.bf16.msra.mxu0 0
    %738 = vmatprep.subr.bf16.mxu0 0
    %739 = vmatpush1.bf16.msra.mxu0 0
    %740 = vmatprep.mubr.bf16.mxu0 0
    %741 = vmatmul.mubr.bf16.gmra.mrb[0].mxu0 %v703
    %v742 = vpop.f32.mrb[0].mxu0
    %v743 = vadd.f32 0.0, %v742
    %v744 = vpop.f32.mrb[0].mxu0
    %v745 = vpop.f32.mrb[0].mxu0
    %v746 = vpop.f32.mrb[0].mxu0
    %747 = vdwg.mxu0
    %v749 = vsel %vm654, %v631, 0
    %v752 = vsel %vm658, %v648, 0
    %754 = vmatprep.subr.bf16.mxu0 0
    %755 = vmatpush1.bf16.msra.mxu0 %v752
    %756 = vmatprep.subr.bf16.mxu0 0
    %757 = vmatpush1.bf16.msra.mxu0 0
    %758 = vmatprep.subr.bf16.mxu0 0
    %759 = vmatpush1.bf16.msra.mxu0 0
    %760 = vmatprep.subr.bf16.mxu0 0
    %761 = vmatpush1.bf16.msra.mxu0 0
    %762 = vmatprep.subr.bf16.mxu0 0
    %763 = vmatpush1.bf16.msra.mxu0 0
    %764 = vmatprep.subr.bf16.mxu0 0
    %765 = vmatpush1.bf16.msra.mxu0 0
    %766 = vmatprep.subr.bf16.mxu0 0
    %767 = vmatpush1.bf16.msra.mxu0 0
    %768 = vmatprep.subr.bf16.mxu0 0
    %769 = vmatpush1.bf16.msra.mxu0 0
    %770 = vmatprep.subr.bf16.mxu0 0
    %771 = vmatpush1.bf16.msra.mxu0 0
    %772 = vmatprep.subr.bf16.mxu0 0
    %773 = vmatpush1.bf16.msra.mxu0 0
    %774 = vmatprep.subr.bf16.mxu0 0
    %775 = vmatpush1.bf16.msra.mxu0 0
    %776 = vmatprep.subr.bf16.mxu0 0
    %777 = vmatpush1.bf16.msra.mxu0 0
    %778 = vmatprep.subr.bf16.mxu0 0
    %779 = vmatpush1.bf16.msra.mxu0 0
    %780 = vmatprep.subr.bf16.mxu0 0
    %781 = vmatpush1.bf16.msra.mxu0 0
    %782 = vmatprep.subr.bf16.mxu0 0
    %783 = vmatpush1.bf16.msra.mxu0 0
    %784 = vmatprep.subr.bf16.mxu0 0
    %785 = vmatpush1.bf16.msra.mxu0 0
    %786 = vmatprep.mubr.bf16.mxu0 0
    %787 = vmatmul.mubr.bf16.gmra.mrb[0].mxu0 %v749
    %v788 = vpop.f32.mrb[0].mxu0
    %v789 = vadd.f32 0.0, %v788
    %v790 = vpop.f32.mrb[0].mxu0
    %v791 = vpop.f32.mrb[0].mxu0
    %v792 = vpop.f32.mrb[0].mxu0
    %793 = vdwg.mxu0
    %v795 = vsel %vm654, %v632, 0
    %v798 = vsel %vm658, %v649, 0
    %800 = vmatprep.subr.bf16.mxu0 0
    %801 = vmatpush1.bf16.msra.mxu0 %v798
    %802 = vmatprep.subr.bf16.mxu0 0
    %803 = vmatpush1.bf16.msra.mxu0 0
    %804 = vmatprep.subr.bf16.mxu0 0
    %805 = vmatpush1.bf16.msra.mxu0 0
    %806 = vmatprep.subr.bf16.mxu0 0
    %807 = vmatpush1.bf16.msra.mxu0 0
    %808 = vmatprep.subr.bf16.mxu0 0
    %809 = vmatpush1.bf16.msra.mxu0 0
    %810 = vmatprep.subr.bf16.mxu0 0
    %811 = vmatpush1.bf16.msra.mxu0 0
    %812 = vmatprep.subr.bf16.mxu0 0
    %813 = vmatpush1.bf16.msra.mxu0 0
    %814 = vmatprep.subr.bf16.mxu0 0
    %815 = vmatpush1.bf16.msra.mxu0 0
    %816 = vmatprep.subr.bf16.mxu0 0
    %817 = vmatpush1.bf16.msra.mxu0 0
    %818 = vmatprep.subr.bf16.mxu0 0
    %819 = vmatpush1.bf16.msra.mxu0 0
    %820 = vmatprep.subr.bf16.mxu0 0
    %821 = vmatpush1.bf16.msra.mxu0 0
    %822 = vmatprep.subr.bf16.mxu0 0
    %823 = vmatpush1.bf16.msra.mxu0 0
    %824 = vmatprep.subr.bf16.mxu0 0
    %825 = vmatpush1.bf16.msra.mxu0 0
    %826 = vmatprep.subr.bf16.mxu0 0
    %827 = vmatpush1.bf16.msra.mxu0 0
    %828 = vmatprep.subr.bf16.mxu0 0
    %829 = vmatpush1.bf16.msra.mxu0 0
    %830 = vmatprep.subr.bf16.mxu0 0
    %831 = vmatpush1.bf16.msra.mxu0 0
    %832 = vmatprep.mubr.bf16.mxu0 0
    %833 = vmatmul.mubr.bf16.gmra.mrb[0].mxu0 %v795
    %v834 = vpop.f32.mrb[0].mxu0
    %v835 = vadd.f32 0.0, %v834
    %v836 = vpop.f32.mrb[0].mxu0
    %v837 = vpop.f32.mrb[0].mxu0
    %v838 = vpop.f32.mrb[0].mxu0
    %839 = vdwg.mxu0
    %v841 = vsel %vm654, %v633, 0
    %v844 = vsel %vm658, %v650, 0
    %846 = vmatprep.subr.bf16.mxu0 0
    %847 = vmatpush1.bf16.msra.mxu0 %v844
    %848 = vmatprep.subr.bf16.mxu0 0
    %849 = vmatpush1.bf16.msra.mxu0 0
    %850 = vmatprep.subr.bf16.mxu0 0
    %851 = vmatpush1.bf16.msra.mxu0 0
    %852 = vmatprep.subr.bf16.mxu0 0
    %853 = vmatpush1.bf16.msra.mxu0 0
    %854 = vmatprep.subr.bf16.mxu0 0
    %855 = vmatpush1.bf16.msra.mxu0 0
    %856 = vmatprep.subr.bf16.mxu0 0
    %857 = vmatpush1.bf16.msra.mxu0 0
    %858 = vmatprep.subr.bf16.mxu0 0
    %859 = vmatpush1.bf16.msra.mxu0 0
    %860 = vmatprep.subr.bf16.mxu0 0
    %861 = vmatpush1.bf16.msra.mxu0 0
    %862 = vmatprep.subr.bf16.mxu0 0
    %863 = vmatpush1.bf16.msra.mxu0 0
    %864 = vmatprep.subr.bf16.mxu0 0
    %865 = vmatpush1.bf16.msra.mxu0 0
    %866 = vmatprep.subr.bf16.mxu0 0
    %867 = vmatpush1.bf16.msra.mxu0 0
    %868 = vmatprep.subr.bf16.mxu0 0
    %869 = vmatpush1.bf16.msra.mxu0 0
    %870 = vmatprep.subr.bf16.mxu0 0
    %871 = vmatpush1.bf16.msra.mxu0 0
    %872 = vmatprep.subr.bf16.mxu0 0
    %873 = vmatpush1.bf16.msra.mxu0 0
    %874 = vmatprep.subr.bf16.mxu0 0
    %875 = vmatpush1.bf16.msra.mxu0 0
    %876 = vmatprep.subr.bf16.mxu0 0
    %877 = vmatpush1.bf16.msra.mxu0 0
    %878 = vmatprep.mubr.bf16.mxu0 0
    %879 = vmatmul.mubr.bf16.gmra.mrb[0].mxu0 %v841
    %v880 = vpop.f32.mrb[0].mxu0
    %v881 = vadd.f32 0.0, %v880
    %v882 = vpop.f32.mrb[0].mxu0
    %v883 = vpop.f32.mrb[0].mxu0
    %v884 = vpop.f32.mrb[0].mxu0
    %885 = vdwg.mxu0
    %v887 = vsel %vm654, %v634, 0
    %v890 = vsel %vm658, %v651, 0
    %892 = vmatprep.subr.bf16.mxu0 0
    %893 = vmatpush1.bf16.msra.mxu0 %v890
    %894 = vmatprep.subr.bf16.mxu0 0
    %895 = vmatpush1.bf16.msra.mxu0 0
    %896 = vmatprep.subr.bf16.mxu0 0
    %897 = vmatpush1.bf16.msra.mxu0 0
    %898 = vmatprep.subr.bf16.mxu0 0
    %899 = vmatpush1.bf16.msra.mxu0 0
    %900 = vmatprep.subr.bf16.mxu0 0
    %901 = vmatpush1.bf16.msra.mxu0 0
    %902 = vmatprep.subr.bf16.mxu0 0
    %903 = vmatpush1.bf16.msra.mxu0 0
    %904 = vmatprep.subr.bf16.mxu0 0
    %905 = vmatpush1.bf16.msra.mxu0 0
    %906 = vmatprep.subr.bf16.mxu0 0
    %907 = vmatpush1.bf16.msra.mxu0 0
    %908 = vmatprep.subr.bf16.mxu0 0
    %909 = vmatpush1.bf16.msra.mxu0 0
    %910 = vmatprep.subr.bf16.mxu0 0
    %911 = vmatpush1.bf16.msra.mxu0 0
    %912 = vmatprep.subr.bf16.mxu0 0
    %913 = vmatpush1.bf16.msra.mxu0 0
    %914 = vmatprep.subr.bf16.mxu0 0
    %915 = vmatpush1.bf16.msra.mxu0 0
    %916 = vmatprep.subr.bf16.mxu0 0
    %917 = vmatpush1.bf16.msra.mxu0 0
    %918 = vmatprep.subr.bf16.mxu0 0
    %919 = vmatpush1.bf16.msra.mxu0 0
    %920 = vmatprep.subr.bf16.mxu0 0
    %921 = vmatpush1.bf16.msra.mxu0 0
    %922 = vmatprep.subr.bf16.mxu0 0
    %923 = vmatpush1.bf16.msra.mxu0 0
    %924 = vmatprep.mubr.bf16.mxu0 0
    %925 = vmatmul.mubr.bf16.gmra.mrb[0].mxu0 %v887
    %v926 = vpop.f32.mrb[0].mxu0
    %v927 = vadd.f32 0.0, %v926
    %v928 = vpop.f32.mrb[0].mxu0
    %v929 = vpop.f32.mrb[0].mxu0
    %v930 = vpop.f32.mrb[0].mxu0
    %931 = vdwg.mxu0
    %v933 = vsel %vm654, %v635, 0
    %v936 = vsel %vm658, %v652, 0
    %938 = vmatprep.subr.bf16.mxu0 0
    %939 = vmatpush1.bf16.msra.mxu0 %v936
    %940 = vmatprep.subr.bf16.mxu0 0
    %941 = vmatpush1.bf16.msra.mxu0 0
    %942 = vmatprep.subr.bf16.mxu0 0
    %943 = vmatpush1.bf16.msra.mxu0 0
    %944 = vmatprep.subr.bf16.mxu0 0
    %945 = vmatpush1.bf16.msra.mxu0 0
    %946 = vmatprep.subr.bf16.mxu0 0
    %947 = vmatpush1.bf16.msra.mxu0 0
    %948 = vmatprep.subr.bf16.mxu0 0
    %949 = vmatpush1.bf16.msra.mxu0 0
    %950 = vmatprep.subr.bf16.mxu0 0
    %951 = vmatpush1.bf16.msra.mxu0 0
    %952 = vmatprep.subr.bf16.mxu0 0
    %953 = vmatpush1.bf16.msra.mxu0 0
    %954 = vmatprep.subr.bf16.mxu0 0
    %955 = vmatpush1.bf16.msra.mxu0 0
    %956 = vmatprep.subr.bf16.mxu0 0
    %957 = vmatpush1.bf16.msra.mxu0 0
    %958 = vmatprep.subr.bf16.mxu0 0
    %959 = vmatpush1.bf16.msra.mxu0 0
    %960 = vmatprep.subr.bf16.mxu0 0
    %961 = vmatpush1.bf16.msra.mxu0 0
    %962 = vmatprep.subr.bf16.mxu0 0
    %963 = vmatpush1.bf16.msra.mxu0 0
    %964 = vmatprep.subr.bf16.mxu0 0
    %965 = vmatpush1.bf16.msra.mxu0 0
    %966 = vmatprep.subr.bf16.mxu0 0
    %967 = vmatpush1.bf16.msra.mxu0 0
    %968 = vmatprep.subr.bf16.mxu0 0
    %969 = vmatpush1.bf16.msra.mxu0 0
    %970 = vmatprep.mubr.bf16.mxu0 0
    %971 = vmatmul.mubr.bf16.gmra.mrb[0].mxu0 %v933
    %v972 = vpop.f32.mrb[0].mxu0
    %v973 = vadd.f32 0.0, %v972
    %v974 = vpop.f32.mrb[0].mxu0
    %v975 = vpop.f32.mrb[0].mxu0
    %v976 = vpop.f32.mrb[0].mxu0
    %977 = vdwg.mxu0
    %v979 = vsel %vm654, %v636, 0
    %v982 = vsel %vm658, %v653, 0
    %984 = vmatprep.subr.bf16.mxu0 0
    %985 = vmatpush1.bf16.msra.mxu0 %v982
    %986 = vmatprep.subr.bf16.mxu0 0
    %987 = vmatpush1.bf16.msra.mxu0 0
    %988 = vmatprep.subr.bf16.mxu0 0
    %989 = vmatpush1.bf16.msra.mxu0 0
    %990 = vmatprep.subr.bf16.mxu0 0
    %991 = vmatpush1.bf16.msra.mxu0 0
    %992 = vmatprep.subr.bf16.mxu0 0
    %993 = vmatpush1.bf16.msra.mxu0 0
    %994 = vmatprep.subr.bf16.mxu0 0
    %995 = vmatpush1.bf16.msra.mxu0 0
    %996 = vmatprep.subr.bf16.mxu0 0
    %997 = vmatpush1.bf16.msra.mxu0 0
    %998 = vmatprep.subr.bf16.mxu0 0
    %999 = vmatpush1.bf16.msra.mxu0 0
    %1000 = vmatprep.subr.bf16.mxu0 0
    %1001 = vmatpush1.bf16.msra.mxu0 0
    %1002 = vmatprep.subr.bf16.mxu0 0
    %1003 = vmatpush1.bf16.msra.mxu0 0
    %1004 = vmatprep.subr.bf16.mxu0 0
    %1005 = vmatpush1.bf16.msra.mxu0 0
    %1006 = vmatprep.subr.bf16.mxu0 0
    %1007 = vmatpush1.bf16.msra.mxu0 0
    %1008 = vmatprep.subr.bf16.mxu0 0
    %1009 = vmatpush1.bf16.msra.mxu0 0
    %1010 = vmatprep.subr.bf16.mxu0 0
    %1011 = vmatpush1.bf16.msra.mxu0 0
    %1012 = vmatprep.subr.bf16.mxu0 0
    %1013 = vmatpush1.bf16.msra.mxu0 0
    %1014 = vmatprep.subr.bf16.mxu0 0
    %1015 = vmatpush1.bf16.msra.mxu0 0
    %1016 = vmatprep.mubr.bf16.mxu0 0
    %1017 = vmatmul.mubr.bf16.gmra.mrb[0].mxu0 %v979
    %v1018 = vpop.f32.mrb[0].mxu0
    %v1019 = vadd.f32 0.0, %v1018
    %v1020 = vpop.f32.mrb[0].mxu0
    %v1021 = vpop.f32.mrb[0].mxu0
    %v1022 = vpop.f32.mrb[0].mxu0
    %1023 = vdwg.mxu0
    %v1024 = vpack.c.bf16 %v697, %v697
    %v1025 = vpack.c.bf16 %v743, %v743
    %v1026 = vpack.c.bf16 %v789, %v789
    %v1027 = vpack.c.bf16 %v835, %v835
    %v1028 = vpack.c.bf16 %v881, %v881
    %v1029 = vpack.c.bf16 %v927, %v927
    %v1030 = vpack.c.bf16 %v973, %v973
    %v1031 = vpack.c.bf16 %v1019, %v1019
    %1033 = vrot.lane.b32.xlu0 %v1024, 120
    %v1034 = vpop.permute.xlu0 %1033
    %v1036 = vsel %vm654, %v1024, 0
    %v1039 = vsel %vm654, %v1034, 0
    %1041 = vmatprep.subr.bf16.mxu0 0
    %1042 = vmatpush1.bf16.xpose.msra.mxu0 %v1039
    %1043 = vmatprep.subr.bf16.mxu0 0
    %1044 = vmatpush1.bf16.xpose.msra.mxu0 0
    %1045 = vmatprep.subr.bf16.mxu0 0
    %1046 = vmatpush1.bf16.xpose.msra.mxu0 0
    %1047 = vmatprep.subr.bf16.mxu0 0
    %1048 = vmatpush1.bf16.xpose.msra.mxu0 0
    %1049 = vmatprep.subr.bf16.mxu0 0
    %1050 = vmatpush1.bf16.xpose.msra.mxu0 0
    %1051 = vmatprep.subr.bf16.mxu0 0
    %1052 = vmatpush1.bf16.xpose.msra.mxu0 0
    %1053 = vmatprep.subr.bf16.mxu0 0
    %1054 = vmatpush1.bf16.xpose.msra.mxu0 0
    %1055 = vmatprep.subr.bf16.mxu0 0
    %1056 = vmatpush1.bf16.xpose.msra.mxu0 0
    %1057 = vmatprep.subr.bf16.mxu0 0
    %1058 = vmatpush1.bf16.xpose.msra.mxu0 0
    %1059 = vmatprep.subr.bf16.mxu0 0
    %1060 = vmatpush1.bf16.xpose.msra.mxu0 0
    %1061 = vmatprep.subr.bf16.mxu0 0
    %1062 = vmatpush1.bf16.xpose.msra.mxu0 0
    %1063 = vmatprep.subr.bf16.mxu0 0
    %1064 = vmatpush1.bf16.xpose.msra.mxu0 0
    %1065 = vmatprep.subr.bf16.mxu0 0
    %1066 = vmatpush1.bf16.xpose.msra.mxu0 0
    %1067 = vmatprep.subr.bf16.mxu0 0
    %1068 = vmatpush1.bf16.xpose.msra.mxu0 0
    %1069 = vmatprep.subr.bf16.mxu0 0
    %1070 = vmatpush1.bf16.xpose.msra.mxu0 0
    %1071 = vmatprep.subr.bf16.mxu0 0
    %1072 = vmatpush1.bf16.xpose.msra.mxu0 0
    %1073 = vmatprep.mubr.bf16.mxu0 0
    %1074 = vmatmul.mubr.bf16.gmra.mrb[0].mxu0 %v1036
    %v1075 = vpop.f32.mrb[0].mxu0
    %v1076 = vadd.f32 0.0, %v1075
    %v1077 = vpop.f32.mrb[0].mxu0
    %v1078 = vpop.f32.mrb[0].mxu0
    %v1079 = vpop.f32.mrb[0].mxu0
    %1080 = vdwg.mxu0
    %1082 = vrot.lane.b32.xlu0 %v1025, 120
    %v1083 = vpop.permute.xlu0 %1082
    %v1085 = vsel %vm654, %v1025, 0
    %v1088 = vsel %vm654, %v1083, 0
    %1090 = vmatprep.subr.bf16.mxu0 0
    %1091 = vmatpush1.bf16.xpose.msra.mxu0 %v1088
    %1092 = vmatprep.subr.bf16.mxu0 0
    %1093 = vmatpush1.bf16.xpose.msra.mxu0 0
    %1094 = vmatprep.subr.bf16.mxu0 0
    %1095 = vmatpush1.bf16.xpose.msra.mxu0 0
    %1096 = vmatprep.subr.bf16.mxu0 0
    %1097 = vmatpush1.bf16.xpose.msra.mxu0 0
    %1098 = vmatprep.subr.bf16.mxu0 0
    %1099 = vmatpush1.bf16.xpose.msra.mxu0 0
    %1100 = vmatprep.subr.bf16.mxu0 0
    %1101 = vmatpush1.bf16.xpose.msra.mxu0 0
    %1102 = vmatprep.subr.bf16.mxu0 0
    %1103 = vmatpush1.bf16.xpose.msra.mxu0 0
    %1104 = vmatprep.subr.bf16.mxu0 0
    %1105 = vmatpush1.bf16.xpose.msra.mxu0 0
    %1106 = vmatprep.subr.bf16.mxu0 0
    %1107 = vmatpush1.bf16.xpose.msra.mxu0 0
    %1108 = vmatprep.subr.bf16.mxu0 0
    %1109 = vmatpush1.bf16.xpose.msra.mxu0 0
    %1110 = vmatprep.subr.bf16.mxu0 0
    %1111 = vmatpush1.bf16.xpose.msra.mxu0 0
    %1112 = vmatprep.subr.bf16.mxu0 0
    %1113 = vmatpush1.bf16.xpose.msra.mxu0 0
    %1114 = vmatprep.subr.bf16.mxu0 0
    %1115 = vmatpush1.bf16.xpose.msra.mxu0 0
    %1116 = vmatprep.subr.bf16.mxu0 0
    %1117 = vmatpush1.bf16.xpose.msra.mxu0 0
    %1118 = vmatprep.subr.bf16.mxu0 0
    %1119 = vmatpush1.bf16.xpose.msra.mxu0 0
    %1120 = vmatprep.subr.bf16.mxu0 0
    %1121 = vmatpush1.bf16.xpose.msra.mxu0 0
    %1122 = vmatprep.mubr.bf16.mxu0 0
    %1123 = vmatmul.mubr.bf16.gmra.mrb[0].mxu0 %v1085
    %v1124 = vpop.f32.mrb[0].mxu0
    %v1125 = vadd.f32 0.0, %v1124
    %v1126 = vpop.f32.mrb[0].mxu0
    %v1127 = vpop.f32.mrb[0].mxu0
    %v1128 = vpop.f32.mrb[0].mxu0
    %1129 = vdwg.mxu0
    %1131 = vrot.lane.b32.xlu0 %v1026, 120
    %v1132 = vpop.permute.xlu0 %1131
    %v1134 = vsel %vm654, %v1026, 0
    %v1137 = vsel %vm654, %v1132, 0
    %1139 = vmatprep.subr.bf16.mxu0 0
    %1140 = vmatpush1.bf16.xpose.msra.mxu0 %v1137
    %1141 = vmatprep.subr.bf16.mxu0 0
    %1142 = vmatpush1.bf16.xpose.msra.mxu0 0
    %1143 = vmatprep.subr.bf16.mxu0 0
    %1144 = vmatpush1.bf16.xpose.msra.mxu0 0
    %1145 = vmatprep.subr.bf16.mxu0 0
    %1146 = vmatpush1.bf16.xpose.msra.mxu0 0
    %1147 = vmatprep.subr.bf16.mxu0 0
    %1148 = vmatpush1.bf16.xpose.msra.mxu0 0
    %1149 = vmatprep.subr.bf16.mxu0 0
    %1150 = vmatpush1.bf16.xpose.msra.mxu0 0
    %1151 = vmatprep.subr.bf16.mxu0 0
    %1152 = vmatpush1.bf16.xpose.msra.mxu0 0
    %1153 = vmatprep.subr.bf16.mxu0 0
    %1154 = vmatpush1.bf16.xpose.msra.mxu0 0
    %1155 = vmatprep.subr.bf16.mxu0 0
    %1156 = vmatpush1.bf16.xpose.msra.mxu0 0
    %1157 = vmatprep.subr.bf16.mxu0 0
    %1158 = vmatpush1.bf16.xpose.msra.mxu0 0
    %1159 = vmatprep.subr.bf16.mxu0 0
    %1160 = vmatpush1.bf16.xpose.msra.mxu0 0
    %1161 = vmatprep.subr.bf16.mxu0 0
    %1162 = vmatpush1.bf16.xpose.msra.mxu0 0
    %1163 = vmatprep.subr.bf16.mxu0 0
    %1164 = vmatpush1.bf16.xpose.msra.mxu0 0
    %1165 = vmatprep.subr.bf16.mxu0 0
    %1166 = vmatpush1.bf16.xpose.msra.mxu0 0
    %1167 = vmatprep.subr.bf16.mxu0 0
    %1168 = vmatpush1.bf16.xpose.msra.mxu0 0
    %1169 = vmatprep.subr.bf16.mxu0 0
    %1170 = vmatpush1.bf16.xpose.msra.mxu0 0
    %1171 = vmatprep.mubr.bf16.mxu0 0
    %1172 = vmatmul.mubr.bf16.gmra.mrb[0].mxu0 %v1134
    %v1173 = vpop.f32.mrb[0].mxu0
    %v1174 = vadd.f32 0.0, %v1173
    %v1175 = vpop.f32.mrb[0].mxu0
    %v1176 = vpop.f32.mrb[0].mxu0
    %v1177 = vpop.f32.mrb[0].mxu0
    %1178 = vdwg.mxu0
    %1180 = vrot.lane.b32.xlu0 %v1027, 120
    %v1181 = vpop.permute.xlu0 %1180
    %v1183 = vsel %vm654, %v1027, 0
    %v1186 = vsel %vm654, %v1181, 0
    %1188 = vmatprep.subr.bf16.mxu0 0
    %1189 = vmatpush1.bf16.xpose.msra.mxu0 %v1186
    %1190 = vmatprep.subr.bf16.mxu0 0
    %1191 = vmatpush1.bf16.xpose.msra.mxu0 0
    %1192 = vmatprep.subr.bf16.mxu0 0
    %1193 = vmatpush1.bf16.xpose.msra.mxu0 0
    %1194 = vmatprep.subr.bf16.mxu0 0
    %1195 = vmatpush1.bf16.xpose.msra.mxu0 0
    %1196 = vmatprep.subr.bf16.mxu0 0
    %1197 = vmatpush1.bf16.xpose.msra.mxu0 0
    %1198 = vmatprep.subr.bf16.mxu0 0
    %1199 = vmatpush1.bf16.xpose.msra.mxu0 0
    %1200 = vmatprep.subr.bf16.mxu0 0
    %1201 = vmatpush1.bf16.xpose.msra.mxu0 0
    %1202 = vmatprep.subr.bf16.mxu0 0
    %1203 = vmatpush1.bf16.xpose.msra.mxu0 0
    %1204 = vmatprep.subr.bf16.mxu0 0
    %1205 = vmatpush1.bf16.xpose.msra.mxu0 0
    %1206 = vmatprep.subr.bf16.mxu0 0
    %1207 = vmatpush1.bf16.xpose.msra.mxu0 0
    %1208 = vmatprep.subr.bf16.mxu0 0
    %1209 = vmatpush1.bf16.xpose.msra.mxu0 0
    %1210 = vmatprep.subr.bf16.mxu0 0
    %1211 = vmatpush1.bf16.xpose.msra.mxu0 0
    %1212 = vmatprep.subr.bf16.mxu0 0
    %1213 = vmatpush1.bf16.xpose.msra.mxu0 0
    %1214 = vmatprep.subr.bf16.mxu0 0
    %1215 = vmatpush1.bf16.xpose.msra.mxu0 0
    %1216 = vmatprep.subr.bf16.mxu0 0
    %1217 = vmatpush1.bf16.xpose.msra.mxu0 0
    %1218 = vmatprep.subr.bf16.mxu0 0
    %1219 = vmatpush1.bf16.xpose.msra.mxu0 0
    %1220 = vmatprep.mubr.bf16.mxu0 0
    %1221 = vmatmul.mubr.bf16.gmra.mrb[0].mxu0 %v1183
    %v1222 = vpop.f32.mrb[0].mxu0
    %v1223 = vadd.f32 0.0, %v1222
    %v1224 = vpop.f32.mrb[0].mxu0
    %v1225 = vpop.f32.mrb[0].mxu0
    %v1226 = vpop.f32.mrb[0].mxu0
    %1227 = vdwg.mxu0
    %1229 = vrot.lane.b32.xlu0 %v1028, 120
    %v1230 = vpop.permute.xlu0 %1229
    %v1232 = vsel %vm654, %v1028, 0
    %v1235 = vsel %vm654, %v1230, 0
    %1237 = vmatprep.subr.bf16.mxu0 0
    %1238 = vmatpush1.bf16.xpose.msra.mxu0 %v1235
    %1239 = vmatprep.subr.bf16.mxu0 0
    %1240 = vmatpush1.bf16.xpose.msra.mxu0 0
    %1241 = vmatprep.subr.bf16.mxu0 0
    %1242 = vmatpush1.bf16.xpose.msra.mxu0 0
    %1243 = vmatprep.subr.bf16.mxu0 0
    %1244 = vmatpush1.bf16.xpose.msra.mxu0 0
    %1245 = vmatprep.subr.bf16.mxu0 0
    %1246 = vmatpush1.bf16.xpose.msra.mxu0 0
    %1247 = vmatprep.subr.bf16.mxu0 0
    %1248 = vmatpush1.bf16.xpose.msra.mxu0 0
    %1249 = vmatprep.subr.bf16.mxu0 0
    %1250 = vmatpush1.bf16.xpose.msra.mxu0 0
    %1251 = vmatprep.subr.bf16.mxu0 0
    %1252 = vmatpush1.bf16.xpose.msra.mxu0 0
    %1253 = vmatprep.subr.bf16.mxu0 0
    %1254 = vmatpush1.bf16.xpose.msra.mxu0 0
    %1255 = vmatprep.subr.bf16.mxu0 0
    %1256 = vmatpush1.bf16.xpose.msra.mxu0 0
    %1257 = vmatprep.subr.bf16.mxu0 0
    %1258 = vmatpush1.bf16.xpose.msra.mxu0 0
    %1259 = vmatprep.subr.bf16.mxu0 0
    %1260 = vmatpush1.bf16.xpose.msra.mxu0 0
    %1261 = vmatprep.subr.bf16.mxu0 0
    %1262 = vmatpush1.bf16.xpose.msra.mxu0 0
    %1263 = vmatprep.subr.bf16.mxu0 0
    %1264 = vmatpush1.bf16.xpose.msra.mxu0 0
    %1265 = vmatprep.subr.bf16.mxu0 0
    %1266 = vmatpush1.bf16.xpose.msra.mxu0 0
    %1267 = vmatprep.subr.bf16.mxu0 0
    %1268 = vmatpush1.bf16.xpose.msra.mxu0 0
    %1269 = vmatprep.mubr.bf16.mxu0 0
    %1270 = vmatmul.mubr.bf16.gmra.mrb[0].mxu0 %v1232
    %v1271 = vpop.f32.mrb[0].mxu0
    %v1272 = vadd.f32 0.0, %v1271
    %v1273 = vpop.f32.mrb[0].mxu0
    %v1274 = vpop.f32.mrb[0].mxu0
    %v1275 = vpop.f32.mrb[0].mxu0
    %1276 = vdwg.mxu0
    %1278 = vrot.lane.b32.xlu0 %v1029, 120
    %v1279 = vpop.permute.xlu0 %1278
    %v1281 = vsel %vm654, %v1029, 0
    %v1284 = vsel %vm654, %v1279, 0
    %1286 = vmatprep.subr.bf16.mxu0 0
    %1287 = vmatpush1.bf16.xpose.msra.mxu0 %v1284
    %1288 = vmatprep.subr.bf16.mxu0 0
    %1289 = vmatpush1.bf16.xpose.msra.mxu0 0
    %1290 = vmatprep.subr.bf16.mxu0 0
    %1291 = vmatpush1.bf16.xpose.msra.mxu0 0
    %1292 = vmatprep.subr.bf16.mxu0 0
    %1293 = vmatpush1.bf16.xpose.msra.mxu0 0
    %1294 = vmatprep.subr.bf16.mxu0 0
    %1295 = vmatpush1.bf16.xpose.msra.mxu0 0
    %1296 = vmatprep.subr.bf16.mxu0 0
    %1297 = vmatpush1.bf16.xpose.msra.mxu0 0
    %1298 = vmatprep.subr.bf16.mxu0 0
    %1299 = vmatpush1.bf16.xpose.msra.mxu0 0
    %1300 = vmatprep.subr.bf16.mxu0 0
    %1301 = vmatpush1.bf16.xpose.msra.mxu0 0
    %1302 = vmatprep.subr.bf16.mxu0 0
    %1303 = vmatpush1.bf16.xpose.msra.mxu0 0
    %1304 = vmatprep.subr.bf16.mxu0 0
    %1305 = vmatpush1.bf16.xpose.msra.mxu0 0
    %1306 = vmatprep.subr.bf16.mxu0 0
    %1307 = vmatpush1.bf16.xpose.msra.mxu0 0
    %1308 = vmatprep.subr.bf16.mxu0 0
    %1309 = vmatpush1.bf16.xpose.msra.mxu0 0
    %1310 = vmatprep.subr.bf16.mxu0 0
    %1311 = vmatpush1.bf16.xpose.msra.mxu0 0
    %1312 = vmatprep.subr.bf16.mxu0 0
    %1313 = vmatpush1.bf16.xpose.msra.mxu0 0
    %1314 = vmatprep.subr.bf16.mxu0 0
    %1315 = vmatpush1.bf16.xpose.msra.mxu0 0
    %1316 = vmatprep.subr.bf16.mxu0 0
    %1317 = vmatpush1.bf16.xpose.msra.mxu0 0
    %1318 = vmatprep.mubr.bf16.mxu0 0
    %1319 = vmatmul.mubr.bf16.gmra.mrb[0].mxu0 %v1281
    %v1320 = vpop.f32.mrb[0].mxu0
    %v1321 = vadd.f32 0.0, %v1320
    %v1322 = vpop.f32.mrb[0].mxu0
    %v1323 = vpop.f32.mrb[0].mxu0
    %v1324 = vpop.f32.mrb[0].mxu0
    %1325 = vdwg.mxu0
    %1327 = vrot.lane.b32.xlu0 %v1030, 120
    %v1328 = vpop.permute.xlu0 %1327
    %v1330 = vsel %vm654, %v1030, 0
    %v1333 = vsel %vm654, %v1328, 0
    %1335 = vmatprep.subr.bf16.mxu0 0
    %1336 = vmatpush1.bf16.xpose.msra.mxu0 %v1333
    %1337 = vmatprep.subr.bf16.mxu0 0
    %1338 = vmatpush1.bf16.xpose.msra.mxu0 0
    %1339 = vmatprep.subr.bf16.mxu0 0
    %1340 = vmatpush1.bf16.xpose.msra.mxu0 0
    %1341 = vmatprep.subr.bf16.mxu0 0
    %1342 = vmatpush1.bf16.xpose.msra.mxu0 0
    %1343 = vmatprep.subr.bf16.mxu0 0
    %1344 = vmatpush1.bf16.xpose.msra.mxu0 0
    %1345 = vmatprep.subr.bf16.mxu0 0
    %1346 = vmatpush1.bf16.xpose.msra.mxu0 0
    %1347 = vmatprep.subr.bf16.mxu0 0
    %1348 = vmatpush1.bf16.xpose.msra.mxu0 0
    %1349 = vmatprep.subr.bf16.mxu0 0
    %1350 = vmatpush1.bf16.xpose.msra.mxu0 0
    %1351 = vmatprep.subr.bf16.mxu0 0
    %1352 = vmatpush1.bf16.xpose.msra.mxu0 0
    %1353 = vmatprep.subr.bf16.mxu0 0
    %1354 = vmatpush1.bf16.xpose.msra.mxu0 0
    %1355 = vmatprep.subr.bf16.mxu0 0
    %1356 = vmatpush1.bf16.xpose.msra.mxu0 0
    %1357 = vmatprep.subr.bf16.mxu0 0
    %1358 = vmatpush1.bf16.xpose.msra.mxu0 0
    %1359 = vmatprep.subr.bf16.mxu0 0
    %1360 = vmatpush1.bf16.xpose.msra.mxu0 0
    %1361 = vmatprep.subr.bf16.mxu0 0
    %1362 = vmatpush1.bf16.xpose.msra.mxu0 0
    %1363 = vmatprep.subr.bf16.mxu0 0
    %1364 = vmatpush1.bf16.xpose.msra.mxu0 0
    %1365 = vmatprep.subr.bf16.mxu0 0
    %1366 = vmatpush1.bf16.xpose.msra.mxu0 0
    %1367 = vmatprep.mubr.bf16.mxu0 0
    %1368 = vmatmul.mubr.bf16.gmra.mrb[0].mxu0 %v1330
    %v1369 = vpop.f32.mrb[0].mxu0
    %v1370 = vadd.f32 0.0, %v1369
    %v1371 = vpop.f32.mrb[0].mxu0
    %v1372 = vpop.f32.mrb[0].mxu0
    %v1373 = vpop.f32.mrb[0].mxu0
    %1374 = vdwg.mxu0
    %1376 = vrot.lane.b32.xlu0 %v1031, 120
    %v1377 = vpop.permute.xlu0 %1376
    %v1379 = vsel %vm654, %v1031, 0
    %v1382 = vsel %vm654, %v1377, 0
    %1384 = vmatprep.subr.bf16.mxu0 0
    %1385 = vmatpush1.bf16.xpose.msra.mxu0 %v1382
    %1386 = vmatprep.subr.bf16.mxu0 0
    %1387 = vmatpush1.bf16.xpose.msra.mxu0 0
    %1388 = vmatprep.subr.bf16.mxu0 0
    %1389 = vmatpush1.bf16.xpose.msra.mxu0 0
    %1390 = vmatprep.subr.bf16.mxu0 0
    %1391 = vmatpush1.bf16.xpose.msra.mxu0 0
    %1392 = vmatprep.subr.bf16.mxu0 0
    %1393 = vmatpush1.bf16.xpose.msra.mxu0 0
    %1394 = vmatprep.subr.bf16.mxu0 0
    %1395 = vmatpush1.bf16.xpose.msra.mxu0 0
    %1396 = vmatprep.subr.bf16.mxu0 0
    %1397 = vmatpush1.bf16.xpose.msra.mxu0 0
    %1398 = vmatprep.subr.bf16.mxu0 0
    %1399 = vmatpush1.bf16.xpose.msra.mxu0 0
    %1400 = vmatprep.subr.bf16.mxu0 0
    %1401 = vmatpush1.bf16.xpose.msra.mxu0 0
    %1402 = vmatprep.subr.bf16.mxu0 0
    %1403 = vmatpush1.bf16.xpose.msra.mxu0 0
    %1404 = vmatprep.subr.bf16.mxu0 0
    %1405 = vmatpush1.bf16.xpose.msra.mxu0 0
    %1406 = vmatprep.subr.bf16.mxu0 0
    %1407 = vmatpush1.bf16.xpose.msra.mxu0 0
    %1408 = vmatprep.subr.bf16.mxu0 0
    %1409 = vmatpush1.bf16.xpose.msra.mxu0 0
    %1410 = vmatprep.subr.bf16.mxu0 0
    %1411 = vmatpush1.bf16.xpose.msra.mxu0 0
    %1412 = vmatprep.subr.bf16.mxu0 0
    %1413 = vmatpush1.bf16.xpose.msra.mxu0 0
    %1414 = vmatprep.subr.bf16.mxu0 0
    %1415 = vmatpush1.bf16.xpose.msra.mxu0 0
    %1416 = vmatprep.mubr.bf16.mxu0 0
    %1417 = vmatmul.mubr.bf16.gmra.mrb[0].mxu0 %v1379
    %v1418 = vpop.f32.mrb[0].mxu0
    %v1419 = vadd.f32 0.0, %v1418
    %v1420 = vpop.f32.mrb[0].mxu0
    %v1421 = vpop.f32.mrb[0].mxu0
    %v1422 = vpop.f32.mrb[0].mxu0
    %1423 = vdwg.mxu0
    %v1424 = vsel %vm654, %v1076, -inf
    %1425 = vmax.xlane.f32.xlu0 %v1424
    %v1426 = vpop.xlane.xlu0 %1425
    %v1427 = vsel %vm654, %v1125, -inf
    %1428 = vmax.xlane.f32.xlu0 %v1427
    %v1429 = vpop.xlane.xlu0 %1428
    %v1430 = vsel %vm654, %v1174, -inf
    %1431 = vmax.xlane.f32.xlu0 %v1430
    %v1432 = vpop.xlane.xlu0 %1431
    %v1433 = vsel %vm654, %v1223, -inf
    %1434 = vmax.xlane.f32.xlu0 %v1433
    %v1435 = vpop.xlane.xlu0 %1434
    %v1436 = vsel %vm654, %v1272, -inf
    %1437 = vmax.xlane.f32.xlu0 %v1436
    %v1438 = vpop.xlane.xlu0 %1437
    %v1439 = vsel %vm654, %v1321, -inf
    %1440 = vmax.xlane.f32.xlu0 %v1439
    %v1441 = vpop.xlane.xlu0 %1440
    %v1442 = vsel %vm654, %v1370, -inf
    %1443 = vmax.xlane.f32.xlu0 %v1442
    %v1444 = vpop.xlane.xlu0 %1443
    %v1445 = vsel %vm654, %v1419, -inf
    %1446 = vmax.xlane.f32.xlu0 %v1445
    %v1447 = vpop.xlane.xlu0 %1446
    %v1448 = vsub.f32 %v1076, %v1426
    %v1449 = vsub.f32 %v1125, %v1429
    %v1450 = vsub.f32 %v1174, %v1432
    %v1451 = vsub.f32 %v1223, %v1435
    %v1452 = vsub.f32 %v1272, %v1438
    %v1453 = vsub.f32 %v1321, %v1441
    %v1454 = vsub.f32 %v1370, %v1444
    %v1455 = vsub.f32 %v1419, %v1447
    %v1456 = vmul.f32 %v1448, 1.442695
    %v1457 = vpow.pop %v1456
    %v1458 = vmul.f32 %v1449, 1.442695
    %v1459 = vpow.pop %v1458
    %v1460 = vmul.f32 %v1450, 1.442695
    %v1461 = vpow.pop %v1460
    %v1462 = vmul.f32 %v1451, 1.442695
    %v1463 = vpow.pop %v1462
    %v1464 = vmul.f32 %v1452, 1.442695
    %v1465 = vpow.pop %v1464
    %v1466 = vmul.f32 %v1453, 1.442695
    %v1467 = vpow.pop %v1466
    %v1468 = vmul.f32 %v1454, 1.442695
    %v1469 = vpow.pop %v1468
    %v1470 = vmul.f32 %v1455, 1.442695
    %v1471 = vpow.pop %v1470
    %v1472 = vsel %vm654, %v1457, 0.0
    %1473 = vadd.xlane.f32.xlu0 %v1472
    %v1474 = vpop.xlane.xlu0 %1473
    %v1475 = vsel %vm654, %v1459, 0.0
    %1476 = vadd.xlane.f32.xlu0 %v1475
    %v1477 = vpop.xlane.xlu0 %1476
    %v1478 = vsel %vm654, %v1461, 0.0
    %1479 = vadd.xlane.f32.xlu0 %v1478
    %v1480 = vpop.xlane.xlu0 %1479
    %v1481 = vsel %vm654, %v1463, 0.0
    %1482 = vadd.xlane.f32.xlu0 %v1481
    %v1483 = vpop.xlane.xlu0 %1482
    %v1484 = vsel %vm654, %v1465, 0.0
    %1485 = vadd.xlane.f32.xlu0 %v1484
    %v1486 = vpop.xlane.xlu0 %1485
    %v1487 = vsel %vm654, %v1467, 0.0
    %1488 = vadd.xlane.f32.xlu0 %v1487
    %v1489 = vpop.xlane.xlu0 %1488
    %v1490 = vsel %vm654, %v1469, 0.0
    %1491 = vadd.xlane.f32.xlu0 %v1490
    %v1492 = vpop.xlane.xlu0 %1491
    %v1493 = vsel %vm654, %v1471, 0.0
    %1494 = vadd.xlane.f32.xlu0 %v1493
    %v1495 = vpop.xlane.xlu0 %1494
    %v1496 = vrcp.pop %v1474
    %v1497 = vmul.f32 %v1457, %v1496
    %v1498 = vrcp.pop %v1477
    %v1499 = vmul.f32 %v1459, %v1498
    %v1500 = vrcp.pop %v1480
    %v1501 = vmul.f32 %v1461, %v1500
    %v1502 = vrcp.pop %v1483
    %v1503 = vmul.f32 %v1463, %v1502
    %v1504 = vrcp.pop %v1486
    %v1505 = vmul.f32 %v1465, %v1504
    %v1506 = vrcp.pop %v1489
    %v1507 = vmul.f32 %v1467, %v1506
    %v1508 = vrcp.pop %v1492
    %v1509 = vmul.f32 %v1469, %v1508
    %v1510 = vrcp.pop %v1495
    %v1511 = vmul.f32 %v1471, %v1510
    %v1512 = vpack.c.bf16 %v1497, %v1497
    %v1513 = vpack.c.bf16 %v1499, %v1499
    %v1514 = vpack.c.bf16 %v1501, %v1501
    %v1515 = vpack.c.bf16 %v1503, %v1503
    %v1516 = vpack.c.bf16 %v1505, %v1505
    %v1517 = vpack.c.bf16 %v1507, %v1507
    %v1518 = vpack.c.bf16 %v1509, %v1509
    %v1519 = vpack.c.bf16 %v1511, %v1511
    %1520 = vrot.lane.b32.xlu0 %v1024, 112
    %v1521 = vpop.permute.xlu0 %1520
    %v1523 = vsel %vm654, %v1512, 0
    %v1526 = vsel %vm658, %v1521, 0
    %1528 = vmatprep.subr.bf16.mxu0 0
    %1529 = vmatpush1.bf16.msra.mxu0 %v1526
    %1530 = vmatprep.subr.bf16.mxu0 0
    %1531 = vmatpush1.bf16.msra.mxu0 0
    %1532 = vmatprep.subr.bf16.mxu0 0
    %1533 = vmatpush1.bf16.msra.mxu0 0
    %1534 = vmatprep.subr.bf16.mxu0 0
    %1535 = vmatpush1.bf16.msra.mxu0 0
    %1536 = vmatprep.subr.bf16.mxu0 0
    %1537 = vmatpush1.bf16.msra.mxu0 0
    %1538 = vmatprep.subr.bf16.mxu0 0
    %1539 = vmatpush1.bf16.msra.mxu0 0
    %1540 = vmatprep.subr.bf16.mxu0 0
    %1541 = vmatpush1.bf16.msra.mxu0 0
    %1542 = vmatprep.subr.bf16.mxu0 0
    %1543 = vmatpush1.bf16.msra.mxu0 0
    %1544 = vmatprep.subr.bf16.mxu0 0
    %1545 = vmatpush1.bf16.msra.mxu0 0
    %1546 = vmatprep.subr.bf16.mxu0 0
    %1547 = vmatpush1.bf16.msra.mxu0 0
    %1548 = vmatprep.subr.bf16.mxu0 0
    %1549 = vmatpush1.bf16.msra.mxu0 0
    %1550 = vmatprep.subr.bf16.mxu0 0
    %1551 = vmatpush1.bf16.msra.mxu0 0
    %1552 = vmatprep.subr.bf16.mxu0 0
    %1553 = vmatpush1.bf16.msra.mxu0 0
    %1554 = vmatprep.subr.bf16.mxu0 0
    %1555 = vmatpush1.bf16.msra.mxu0 0
    %1556 = vmatprep.subr.bf16.mxu0 0
    %1557 = vmatpush1.bf16.msra.mxu0 0
    %1558 = vmatprep.subr.bf16.mxu0 0
    %1559 = vmatpush1.bf16.msra.mxu0 0
    %1560 = vmatprep.mubr.bf16.mxu0 0
    %1561 = vmatmul.mubr.bf16.gmra.mrb[0].mxu0 %v1523
    %v1562 = vpop.f32.mrb[0].mxu0
    %v1563 = vadd.f32 0.0, %v1562
    %v1564 = vpop.f32.mrb[0].mxu0
    %v1565 = vpop.f32.mrb[0].mxu0
    %v1566 = vpop.f32.mrb[0].mxu0
    %1567 = vdwg.mxu0
    %1568 = vrot.lane.b32.xlu0 %v1025, 112
    %v1569 = vpop.permute.xlu0 %1568
    %v1571 = vsel %vm654, %v1513, 0
    %v1574 = vsel %vm658, %v1569, 0
    %1576 = vmatprep.subr.bf16.mxu0 0
    %1577 = vmatpush1.bf16.msra.mxu0 %v1574
    %1578 = vmatprep.subr.bf16.mxu0 0
    %1579 = vmatpush1.bf16.msra.mxu0 0
    %1580 = vmatprep.subr.bf16.mxu0 0
    %1581 = vmatpush1.bf16.msra.mxu0 0
    %1582 = vmatprep.subr.bf16.mxu0 0
    %1583 = vmatpush1.bf16.msra.mxu0 0
    %1584 = vmatprep.subr.bf16.mxu0 0
    %1585 = vmatpush1.bf16.msra.mxu0 0
    %1586 = vmatprep.subr.bf16.mxu0 0
    %1587 = vmatpush1.bf16.msra.mxu0 0
    %1588 = vmatprep.subr.bf16.mxu0 0
    %1589 = vmatpush1.bf16.msra.mxu0 0
    %1590 = vmatprep.subr.bf16.mxu0 0
    %1591 = vmatpush1.bf16.msra.mxu0 0
    %1592 = vmatprep.subr.bf16.mxu0 0
    %1593 = vmatpush1.bf16.msra.mxu0 0
    %1594 = vmatprep.subr.bf16.mxu0 0
    %1595 = vmatpush1.bf16.msra.mxu0 0
    %1596 = vmatprep.subr.bf16.mxu0 0
    %1597 = vmatpush1.bf16.msra.mxu0 0
    %1598 = vmatprep.subr.bf16.mxu0 0
    %1599 = vmatpush1.bf16.msra.mxu0 0
    %1600 = vmatprep.subr.bf16.mxu0 0
    %1601 = vmatpush1.bf16.msra.mxu0 0
    %1602 = vmatprep.subr.bf16.mxu0 0
    %1603 = vmatpush1.bf16.msra.mxu0 0
    %1604 = vmatprep.subr.bf16.mxu0 0
    %1605 = vmatpush1.bf16.msra.mxu0 0
    %1606 = vmatprep.subr.bf16.mxu0 0
    %1607 = vmatpush1.bf16.msra.mxu0 0
    %1608 = vmatprep.mubr.bf16.mxu0 0
    %1609 = vmatmul.mubr.bf16.gmra.mrb[0].mxu0 %v1571
    %v1610 = vpop.f32.mrb[0].mxu0
    %v1611 = vadd.f32 0.0, %v1610
    %v1612 = vpop.f32.mrb[0].mxu0
    %v1613 = vpop.f32.mrb[0].mxu0
    %v1614 = vpop.f32.mrb[0].mxu0
    %1615 = vdwg.mxu0
    %1616 = vrot.lane.b32.xlu0 %v1026, 112
    %v1617 = vpop.permute.xlu0 %1616
    %v1619 = vsel %vm654, %v1514, 0
    %v1622 = vsel %vm658, %v1617, 0
    %1624 = vmatprep.subr.bf16.mxu0 0
    %1625 = vmatpush1.bf16.msra.mxu0 %v1622
    %1626 = vmatprep.subr.bf16.mxu0 0
    %1627 = vmatpush1.bf16.msra.mxu0 0
    %1628 = vmatprep.subr.bf16.mxu0 0
    %1629 = vmatpush1.bf16.msra.mxu0 0
    %1630 = vmatprep.subr.bf16.mxu0 0
    %1631 = vmatpush1.bf16.msra.mxu0 0
    %1632 = vmatprep.subr.bf16.mxu0 0
    %1633 = vmatpush1.bf16.msra.mxu0 0
    %1634 = vmatprep.subr.bf16.mxu0 0
    %1635 = vmatpush1.bf16.msra.mxu0 0
    %1636 = vmatprep.subr.bf16.mxu0 0
    %1637 = vmatpush1.bf16.msra.mxu0 0
    %1638 = vmatprep.subr.bf16.mxu0 0
    %1639 = vmatpush1.bf16.msra.mxu0 0
    %1640 = vmatprep.subr.bf16.mxu0 0
    %1641 = vmatpush1.bf16.msra.mxu0 0
    %1642 = vmatprep.subr.bf16.mxu0 0
    %1643 = vmatpush1.bf16.msra.mxu0 0
    %1644 = vmatprep.subr.bf16.mxu0 0
    %1645 = vmatpush1.bf16.msra.mxu0 0
    %1646 = vmatprep.subr.bf16.mxu0 0
    %1647 = vmatpush1.bf16.msra.mxu0 0
    %1648 = vmatprep.subr.bf16.mxu0 0
    %1649 = vmatpush1.bf16.msra.mxu0 0
    %1650 = vmatprep.subr.bf16.mxu0 0
    %1651 = vmatpush1.bf16.msra.mxu0 0
    %1652 = vmatprep.subr.bf16.mxu0 0
    %1653 = vmatpush1.bf16.msra.mxu0 0
    %1654 = vmatprep.subr.bf16.mxu0 0
    %1655 = vmatpush1.bf16.msra.mxu0 0
    %1656 = vmatprep.mubr.bf16.mxu0 0
    %1657 = vmatmul.mubr.bf16.gmra.mrb[0].mxu0 %v1619
    %v1658 = vpop.f32.mrb[0].mxu0
    %v1659 = vadd.f32 0.0, %v1658
    %v1660 = vpop.f32.mrb[0].mxu0
    %v1661 = vpop.f32.mrb[0].mxu0
    %v1662 = vpop.f32.mrb[0].mxu0
    %1663 = vdwg.mxu0
    %1664 = vrot.lane.b32.xlu0 %v1027, 112
    %v1665 = vpop.permute.xlu0 %1664
    %v1667 = vsel %vm654, %v1515, 0
    %v1670 = vsel %vm658, %v1665, 0
    %1672 = vmatprep.subr.bf16.mxu0 0
    %1673 = vmatpush1.bf16.msra.mxu0 %v1670
    %1674 = vmatprep.subr.bf16.mxu0 0
    %1675 = vmatpush1.bf16.msra.mxu0 0
    %1676 = vmatprep.subr.bf16.mxu0 0
    %1677 = vmatpush1.bf16.msra.mxu0 0
    %1678 = vmatprep.subr.bf16.mxu0 0
    %1679 = vmatpush1.bf16.msra.mxu0 0
    %1680 = vmatprep.subr.bf16.mxu0 0
    %1681 = vmatpush1.bf16.msra.mxu0 0
    %1682 = vmatprep.subr.bf16.mxu0 0
    %1683 = vmatpush1.bf16.msra.mxu0 0
    %1684 = vmatprep.subr.bf16.mxu0 0
    %1685 = vmatpush1.bf16.msra.mxu0 0
    %1686 = vmatprep.subr.bf16.mxu0 0
    %1687 = vmatpush1.bf16.msra.mxu0 0
    %1688 = vmatprep.subr.bf16.mxu0 0
    %1689 = vmatpush1.bf16.msra.mxu0 0
    %1690 = vmatprep.subr.bf16.mxu0 0
    %1691 = vmatpush1.bf16.msra.mxu0 0
    %1692 = vmatprep.subr.bf16.mxu0 0
    %1693 = vmatpush1.bf16.msra.mxu0 0
    %1694 = vmatprep.subr.bf16.mxu0 0
    %1695 = vmatpush1.bf16.msra.mxu0 0
    %1696 = vmatprep.subr.bf16.mxu0 0
    %1697 = vmatpush1.bf16.msra.mxu0 0
    %1698 = vmatprep.subr.bf16.mxu0 0
    %1699 = vmatpush1.bf16.msra.mxu0 0
    %1700 = vmatprep.subr.bf16.mxu0 0
    %1701 = vmatpush1.bf16.msra.mxu0 0
    %1702 = vmatprep.subr.bf16.mxu0 0
    %1703 = vmatpush1.bf16.msra.mxu0 0
    %1704 = vmatprep.mubr.bf16.mxu0 0
    %1705 = vmatmul.mubr.bf16.gmra.mrb[0].mxu0 %v1667
    %v1706 = vpop.f32.mrb[0].mxu0
    %v1707 = vadd.f32 0.0, %v1706
    %v1708 = vpop.f32.mrb[0].mxu0
    %v1709 = vpop.f32.mrb[0].mxu0
    %v1710 = vpop.f32.mrb[0].mxu0
    %1711 = vdwg.mxu0
    %1712 = vrot.lane.b32.xlu0 %v1028, 112
    %v1713 = vpop.permute.xlu0 %1712
    %v1715 = vsel %vm654, %v1516, 0
    %v1718 = vsel %vm658, %v1713, 0
    %1720 = vmatprep.subr.bf16.mxu0 0
    %1721 = vmatpush1.bf16.msra.mxu0 %v1718
    %1722 = vmatprep.subr.bf16.mxu0 0
    %1723 = vmatpush1.bf16.msra.mxu0 0
    %1724 = vmatprep.subr.bf16.mxu0 0
    %1725 = vmatpush1.bf16.msra.mxu0 0
    %1726 = vmatprep.subr.bf16.mxu0 0
    %1727 = vmatpush1.bf16.msra.mxu0 0
    %1728 = vmatprep.subr.bf16.mxu0 0
    %1729 = vmatpush1.bf16.msra.mxu0 0
    %1730 = vmatprep.subr.bf16.mxu0 0
    %1731 = vmatpush1.bf16.msra.mxu0 0
    %1732 = vmatprep.subr.bf16.mxu0 0
    %1733 = vmatpush1.bf16.msra.mxu0 0
    %1734 = vmatprep.subr.bf16.mxu0 0
    %1735 = vmatpush1.bf16.msra.mxu0 0
    %1736 = vmatprep.subr.bf16.mxu0 0
    %1737 = vmatpush1.bf16.msra.mxu0 0
    %1738 = vmatprep.subr.bf16.mxu0 0
    %1739 = vmatpush1.bf16.msra.mxu0 0
    %1740 = vmatprep.subr.bf16.mxu0 0
    %1741 = vmatpush1.bf16.msra.mxu0 0
    %1742 = vmatprep.subr.bf16.mxu0 0
    %1743 = vmatpush1.bf16.msra.mxu0 0
    %1744 = vmatprep.subr.bf16.mxu0 0
    %1745 = vmatpush1.bf16.msra.mxu0 0
    %1746 = vmatprep.subr.bf16.mxu0 0
    %1747 = vmatpush1.bf16.msra.mxu0 0
    %1748 = vmatprep.subr.bf16.mxu0 0
    %1749 = vmatpush1.bf16.msra.mxu0 0
    %1750 = vmatprep.subr.bf16.mxu0 0
    %1751 = vmatpush1.bf16.msra.mxu0 0
    %1752 = vmatprep.mubr.bf16.mxu0 0
    %1753 = vmatmul.mubr.bf16.gmra.mrb[0].mxu0 %v1715
    %v1754 = vpop.f32.mrb[0].mxu0
    %v1755 = vadd.f32 0.0, %v1754
    %v1756 = vpop.f32.mrb[0].mxu0
    %v1757 = vpop.f32.mrb[0].mxu0
    %v1758 = vpop.f32.mrb[0].mxu0
    %1759 = vdwg.mxu0
    %1760 = vrot.lane.b32.xlu0 %v1029, 112
    %v1761 = vpop.permute.xlu0 %1760
    %v1763 = vsel %vm654, %v1517, 0
    %v1766 = vsel %vm658, %v1761, 0
    %1768 = vmatprep.subr.bf16.mxu0 0
    %1769 = vmatpush1.bf16.msra.mxu0 %v1766
    %1770 = vmatprep.subr.bf16.mxu0 0
    %1771 = vmatpush1.bf16.msra.mxu0 0
    %1772 = vmatprep.subr.bf16.mxu0 0
    %1773 = vmatpush1.bf16.msra.mxu0 0
    %1774 = vmatprep.subr.bf16.mxu0 0
    %1775 = vmatpush1.bf16.msra.mxu0 0
    %1776 = vmatprep.subr.bf16.mxu0 0
    %1777 = vmatpush1.bf16.msra.mxu0 0
    %1778 = vmatprep.subr.bf16.mxu0 0
    %1779 = vmatpush1.bf16.msra.mxu0 0
    %1780 = vmatprep.subr.bf16.mxu0 0
    %1781 = vmatpush1.bf16.msra.mxu0 0
    %1782 = vmatprep.subr.bf16.mxu0 0
    %1783 = vmatpush1.bf16.msra.mxu0 0
    %1784 = vmatprep.subr.bf16.mxu0 0
    %1785 = vmatpush1.bf16.msra.mxu0 0
    %1786 = vmatprep.subr.bf16.mxu0 0
    %1787 = vmatpush1.bf16.msra.mxu0 0
    %1788 = vmatprep.subr.bf16.mxu0 0
    %1789 = vmatpush1.bf16.msra.mxu0 0
    %1790 = vmatprep.subr.bf16.mxu0 0
    %1791 = vmatpush1.bf16.msra.mxu0 0
    %1792 = vmatprep.subr.bf16.mxu0 0
    %1793 = vmatpush1.bf16.msra.mxu0 0
    %1794 = vmatprep.subr.bf16.mxu0 0
    %1795 = vmatpush1.bf16.msra.mxu0 0
    %1796 = vmatprep.subr.bf16.mxu0 0
    %1797 = vmatpush1.bf16.msra.mxu0 0
    %1798 = vmatprep.subr.bf16.mxu0 0
    %1799 = vmatpush1.bf16.msra.mxu0 0
    %1800 = vmatprep.mubr.bf16.mxu0 0
    %1801 = vmatmul.mubr.bf16.gmra.mrb[0].mxu0 %v1763
    %v1802 = vpop.f32.mrb[0].mxu0
    %v1803 = vadd.f32 0.0, %v1802
    %v1804 = vpop.f32.mrb[0].mxu0
    %v1805 = vpop.f32.mrb[0].mxu0
    %v1806 = vpop.f32.mrb[0].mxu0
    %1807 = vdwg.mxu0
    %1808 = vrot.lane.b32.xlu0 %v1030, 112
    %v1809 = vpop.permute.xlu0 %1808
    %v1811 = vsel %vm654, %v1518, 0
    %v1814 = vsel %vm658, %v1809, 0
    %1816 = vmatprep.subr.bf16.mxu0 0
    %1817 = vmatpush1.bf16.msra.mxu0 %v1814
    %1818 = vmatprep.subr.bf16.mxu0 0
    %1819 = vmatpush1.bf16.msra.mxu0 0
    %1820 = vmatprep.subr.bf16.mxu0 0
    %1821 = vmatpush1.bf16.msra.mxu0 0
    %1822 = vmatprep.subr.bf16.mxu0 0
    %1823 = vmatpush1.bf16.msra.mxu0 0
    %1824 = vmatprep.subr.bf16.mxu0 0
    %1825 = vmatpush1.bf16.msra.mxu0 0
    %1826 = vmatprep.subr.bf16.mxu0 0
    %1827 = vmatpush1.bf16.msra.mxu0 0
    %1828 = vmatprep.subr.bf16.mxu0 0
    %1829 = vmatpush1.bf16.msra.mxu0 0
    %1830 = vmatprep.subr.bf16.mxu0 0
    %1831 = vmatpush1.bf16.msra.mxu0 0
    %1832 = vmatprep.subr.bf16.mxu0 0
    %1833 = vmatpush1.bf16.msra.mxu0 0
    %1834 = vmatprep.subr.bf16.mxu0 0
    %1835 = vmatpush1.bf16.msra.mxu0 0
    %1836 = vmatprep.subr.bf16.mxu0 0
    %1837 = vmatpush1.bf16.msra.mxu0 0
    %1838 = vmatprep.subr.bf16.mxu0 0
    %1839 = vmatpush1.bf16.msra.mxu0 0
    %1840 = vmatprep.subr.bf16.mxu0 0
    %1841 = vmatpush1.bf16.msra.mxu0 0
    %1842 = vmatprep.subr.bf16.mxu0 0
    %1843 = vmatpush1.bf16.msra.mxu0 0
    %1844 = vmatprep.subr.bf16.mxu0 0
    %1845 = vmatpush1.bf16.msra.mxu0 0
    %1846 = vmatprep.subr.bf16.mxu0 0
    %1847 = vmatpush1.bf16.msra.mxu0 0
    %1848 = vmatprep.mubr.bf16.mxu0 0
    %1849 = vmatmul.mubr.bf16.gmra.mrb[0].mxu0 %v1811
    %v1850 = vpop.f32.mrb[0].mxu0
    %v1851 = vadd.f32 0.0, %v1850
    %v1852 = vpop.f32.mrb[0].mxu0
    %v1853 = vpop.f32.mrb[0].mxu0
    %v1854 = vpop.f32.mrb[0].mxu0
    %1855 = vdwg.mxu0
    %1856 = vrot.lane.b32.xlu0 %v1031, 112
    %v1857 = vpop.permute.xlu0 %1856
    %v1859 = vsel %vm654, %v1519, 0
    %v1862 = vsel %vm658, %v1857, 0
    %1864 = vmatprep.subr.bf16.mxu0 0
    %1865 = vmatpush1.bf16.msra.mxu0 %v1862
    %1866 = vmatprep.subr.bf16.mxu0 0
    %1867 = vmatpush1.bf16.msra.mxu0 0
    %1868 = vmatprep.subr.bf16.mxu0 0
    %1869 = vmatpush1.bf16.msra.mxu0 0
    %1870 = vmatprep.subr.bf16.mxu0 0
    %1871 = vmatpush1.bf16.msra.mxu0 0
    %1872 = vmatprep.subr.bf16.mxu0 0
    %1873 = vmatpush1.bf16.msra.mxu0 0
    %1874 = vmatprep.subr.bf16.mxu0 0
    %1875 = vmatpush1.bf16.msra.mxu0 0
    %1876 = vmatprep.subr.bf16.mxu0 0
    %1877 = vmatpush1.bf16.msra.mxu0 0
    %1878 = vmatprep.subr.bf16.mxu0 0
    %1879 = vmatpush1.bf16.msra.mxu0 0
    %1880 = vmatprep.subr.bf16.mxu0 0
    %1881 = vmatpush1.bf16.msra.mxu0 0
    %1882 = vmatprep.subr.bf16.mxu0 0
    %1883 = vmatpush1.bf16.msra.mxu0 0
    %1884 = vmatprep.subr.bf16.mxu0 0
    %1885 = vmatpush1.bf16.msra.mxu0 0
    %1886 = vmatprep.subr.bf16.mxu0 0
    %1887 = vmatpush1.bf16.msra.mxu0 0
    %1888 = vmatprep.subr.bf16.mxu0 0
    %1889 = vmatpush1.bf16.msra.mxu0 0
    %1890 = vmatprep.subr.bf16.mxu0 0
    %1891 = vmatpush1.bf16.msra.mxu0 0
    %1892 = vmatprep.subr.bf16.mxu0 0
    %1893 = vmatpush1.bf16.msra.mxu0 0
    %1894 = vmatprep.subr.bf16.mxu0 0
    %1895 = vmatpush1.bf16.msra.mxu0 0
    %1896 = vmatprep.mubr.bf16.mxu0 0
    %1897 = vmatmul.mubr.bf16.gmra.mrb[0].mxu0 %v1859
    %v1898 = vpop.f32.mrb[0].mxu0
    %v1899 = vadd.f32 0.0, %v1898
    %v1900 = vpop.f32.mrb[0].mxu0
    %v1901 = vpop.f32.mrb[0].mxu0
    %v1902 = vpop.f32.mrb[0].mxu0
    %1903 = vdwg.mxu0
    %v1904 = vpack.c.bf16 %v1563, %v1563
    %v1905 = vpack.c.bf16 %v1611, %v1611
    %v1906 = vpack.c.bf16 %v1659, %v1659
    %v1907 = vpack.c.bf16 %v1707, %v1707
    %v1908 = vpack.c.bf16 %v1755, %v1755
    %v1909 = vpack.c.bf16 %v1803, %v1803
    %v1910 = vpack.c.bf16 %v1851, %v1851
    %v1911 = vpack.c.bf16 %v1899, %v1899
    %v1913 = vsel %vm654, %v1904, 0
    %v1916 = vsel %vm658, %v637, 0
    %1918 = vmatprep.subr.bf16.mxu0 0
    %1919 = vmatpush1.bf16.msra.mxu0 %v1916
    %1920 = vmatprep.subr.bf16.mxu0 0
    %1921 = vmatpush1.bf16.msra.mxu0 0
    %1922 = vmatprep.subr.bf16.mxu0 0
    %1923 = vmatpush1.bf16.msra.mxu0 0
    %1924 = vmatprep.subr.bf16.mxu0 0
    %1925 = vmatpush1.bf16.msra.mxu0 0
    %1926 = vmatprep.subr.bf16.mxu0 0
    %1927 = vmatpush1.bf16.msra.mxu0 0
    %1928 = vmatprep.subr.bf16.mxu0 0
    %1929 = vmatpush1.bf16.msra.mxu0 0
    %1930 = vmatprep.subr.bf16.mxu0 0
    %1931 = vmatpush1.bf16.msra.mxu0 0
    %1932 = vmatprep.subr.bf16.mxu0 0
    %1933 = vmatpush1.bf16.msra.mxu0 0
    %1934 = vmatprep.subr.bf16.mxu0 0
    %1935 = vmatpush1.bf16.msra.mxu0 0
    %1936 = vmatprep.subr.bf16.mxu0 0
    %1937 = vmatpush1.bf16.msra.mxu0 0
    %1938 = vmatprep.subr.bf16.mxu0 0
    %1939 = vmatpush1.bf16.msra.mxu0 0
    %1940 = vmatprep.subr.bf16.mxu0 0
    %1941 = vmatpush1.bf16.msra.mxu0 0
    %1942 = vmatprep.subr.bf16.mxu0 0
    %1943 = vmatpush1.bf16.msra.mxu0 0
    %1944 = vmatprep.subr.bf16.mxu0 0
    %1945 = vmatpush1.bf16.msra.mxu0 0
    %1946 = vmatprep.subr.bf16.mxu0 0
    %1947 = vmatpush1.bf16.msra.mxu0 0
    %1948 = vmatprep.subr.bf16.mxu0 0
    %1949 = vmatpush1.bf16.msra.mxu0 0
    %1950 = vmatprep.mubr.bf16.mxu0 0
    %1951 = vmatmul.mubr.bf16.gmra.mrb[0].mxu0 %v1913
    %v1952 = vpop.f32.mrb[0].mxu0
    %v1953 = vadd.f32 0.0, %v1952
    %v1954 = vpop.f32.mrb[0].mxu0
    %v1955 = vpop.f32.mrb[0].mxu0
    %v1956 = vpop.f32.mrb[0].mxu0
    %1957 = vdwg.mxu0
    %v1959 = vsel %vm654, %v1905, 0
    %v1962 = vsel %vm658, %v638, 0
    %1964 = vmatprep.subr.bf16.mxu0 0
    %1965 = vmatpush1.bf16.msra.mxu0 %v1962
    %1966 = vmatprep.subr.bf16.mxu0 0
    %1967 = vmatpush1.bf16.msra.mxu0 0
    %1968 = vmatprep.subr.bf16.mxu0 0
    %1969 = vmatpush1.bf16.msra.mxu0 0
    %1970 = vmatprep.subr.bf16.mxu0 0
    %1971 = vmatpush1.bf16.msra.mxu0 0
    %1972 = vmatprep.subr.bf16.mxu0 0
    %1973 = vmatpush1.bf16.msra.mxu0 0
    %1974 = vmatprep.subr.bf16.mxu0 0
    %1975 = vmatpush1.bf16.msra.mxu0 0
    %1976 = vmatprep.subr.bf16.mxu0 0
    %1977 = vmatpush1.bf16.msra.mxu0 0
    %1978 = vmatprep.subr.bf16.mxu0 0
    %1979 = vmatpush1.bf16.msra.mxu0 0
    %1980 = vmatprep.subr.bf16.mxu0 0
    %1981 = vmatpush1.bf16.msra.mxu0 0
    %1982 = vmatprep.subr.bf16.mxu0 0
    %1983 = vmatpush1.bf16.msra.mxu0 0
    %1984 = vmatprep.subr.bf16.mxu0 0
    %1985 = vmatpush1.bf16.msra.mxu0 0
    %1986 = vmatprep.subr.bf16.mxu0 0
    %1987 = vmatpush1.bf16.msra.mxu0 0
    %1988 = vmatprep.subr.bf16.mxu0 0
    %1989 = vmatpush1.bf16.msra.mxu0 0
    %1990 = vmatprep.subr.bf16.mxu0 0
    %1991 = vmatpush1.bf16.msra.mxu0 0
    %1992 = vmatprep.subr.bf16.mxu0 0
    %1993 = vmatpush1.bf16.msra.mxu0 0
    %1994 = vmatprep.subr.bf16.mxu0 0
    %1995 = vmatpush1.bf16.msra.mxu0 0
    %1996 = vmatprep.mubr.bf16.mxu0 0
    %1997 = vmatmul.mubr.bf16.gmra.mrb[0].mxu0 %v1959
    %v1998 = vpop.f32.mrb[0].mxu0
    %v1999 = vadd.f32 0.0, %v1998
    %v2000 = vpop.f32.mrb[0].mxu0
    %v2001 = vpop.f32.mrb[0].mxu0
    %v2002 = vpop.f32.mrb[0].mxu0
    %2003 = vdwg.mxu0
    %v2005 = vsel %vm654, %v1906, 0
    %v2008 = vsel %vm658, %v639, 0
    %2010 = vmatprep.subr.bf16.mxu0 0
    %2011 = vmatpush1.bf16.msra.mxu0 %v2008
    %2012 = vmatprep.subr.bf16.mxu0 0
    %2013 = vmatpush1.bf16.msra.mxu0 0
    %2014 = vmatprep.subr.bf16.mxu0 0
    %2015 = vmatpush1.bf16.msra.mxu0 0
    %2016 = vmatprep.subr.bf16.mxu0 0
    %2017 = vmatpush1.bf16.msra.mxu0 0
    %2018 = vmatprep.subr.bf16.mxu0 0
    %2019 = vmatpush1.bf16.msra.mxu0 0
    %2020 = vmatprep.subr.bf16.mxu0 0
    %2021 = vmatpush1.bf16.msra.mxu0 0
    %2022 = vmatprep.subr.bf16.mxu0 0
    %2023 = vmatpush1.bf16.msra.mxu0 0
    %2024 = vmatprep.subr.bf16.mxu0 0
    %2025 = vmatpush1.bf16.msra.mxu0 0
    %2026 = vmatprep.subr.bf16.mxu0 0
    %2027 = vmatpush1.bf16.msra.mxu0 0
    %2028 = vmatprep.subr.bf16.mxu0 0
    %2029 = vmatpush1.bf16.msra.mxu0 0
    %2030 = vmatprep.subr.bf16.mxu0 0
    %2031 = vmatpush1.bf16.msra.mxu0 0
    %2032 = vmatprep.subr.bf16.mxu0 0
    %2033 = vmatpush1.bf16.msra.mxu0 0
    %2034 = vmatprep.subr.bf16.mxu0 0
    %2035 = vmatpush1.bf16.msra.mxu0 0
    %2036 = vmatprep.subr.bf16.mxu0 0
    %2037 = vmatpush1.bf16.msra.mxu0 0
    %2038 = vmatprep.subr.bf16.mxu0 0
    %2039 = vmatpush1.bf16.msra.mxu0 0
    %2040 = vmatprep.subr.bf16.mxu0 0
    %2041 = vmatpush1.bf16.msra.mxu0 0
    %2042 = vmatprep.mubr.bf16.mxu0 0
    %2043 = vmatmul.mubr.bf16.gmra.mrb[0].mxu0 %v2005
    %v2044 = vpop.f32.mrb[0].mxu0
    %v2045 = vadd.f32 0.0, %v2044
    %v2046 = vpop.f32.mrb[0].mxu0
    %v2047 = vpop.f32.mrb[0].mxu0
    %v2048 = vpop.f32.mrb[0].mxu0
    %2049 = vdwg.mxu0
    %v2051 = vsel %vm654, %v1907, 0
    %v2054 = vsel %vm658, %v640, 0
    %2056 = vmatprep.subr.bf16.mxu0 0
    %2057 = vmatpush1.bf16.msra.mxu0 %v2054
    %2058 = vmatprep.subr.bf16.mxu0 0
    %2059 = vmatpush1.bf16.msra.mxu0 0
    %2060 = vmatprep.subr.bf16.mxu0 0
    %2061 = vmatpush1.bf16.msra.mxu0 0
    %2062 = vmatprep.subr.bf16.mxu0 0
    %2063 = vmatpush1.bf16.msra.mxu0 0
    %2064 = vmatprep.subr.bf16.mxu0 0
    %2065 = vmatpush1.bf16.msra.mxu0 0
    %2066 = vmatprep.subr.bf16.mxu0 0
    %2067 = vmatpush1.bf16.msra.mxu0 0
    %2068 = vmatprep.subr.bf16.mxu0 0
    %2069 = vmatpush1.bf16.msra.mxu0 0
    %2070 = vmatprep.subr.bf16.mxu0 0
    %2071 = vmatpush1.bf16.msra.mxu0 0
    %2072 = vmatprep.subr.bf16.mxu0 0
    %2073 = vmatpush1.bf16.msra.mxu0 0
    %2074 = vmatprep.subr.bf16.mxu0 0
    %2075 = vmatpush1.bf16.msra.mxu0 0
    %2076 = vmatprep.subr.bf16.mxu0 0
    %2077 = vmatpush1.bf16.msra.mxu0 0
    %2078 = vmatprep.subr.bf16.mxu0 0
    %2079 = vmatpush1.bf16.msra.mxu0 0
    %2080 = vmatprep.subr.bf16.mxu0 0
    %2081 = vmatpush1.bf16.msra.mxu0 0
    %2082 = vmatprep.subr.bf16.mxu0 0
    %2083 = vmatpush1.bf16.msra.mxu0 0
    %2084 = vmatprep.subr.bf16.mxu0 0
    %2085 = vmatpush1.bf16.msra.mxu0 0
    %2086 = vmatprep.subr.bf16.mxu0 0
    %2087 = vmatpush1.bf16.msra.mxu0 0
    %2088 = vmatprep.mubr.bf16.mxu0 0
    %2089 = vmatmul.mubr.bf16.gmra.mrb[0].mxu0 %v2051
    %v2090 = vpop.f32.mrb[0].mxu0
    %v2091 = vadd.f32 0.0, %v2090
    %v2092 = vpop.f32.mrb[0].mxu0
    %v2093 = vpop.f32.mrb[0].mxu0
    %v2094 = vpop.f32.mrb[0].mxu0
    %2095 = vdwg.mxu0
    %v2097 = vsel %vm654, %v1908, 0
    %v2100 = vsel %vm658, %v641, 0
    %2102 = vmatprep.subr.bf16.mxu0 0
    %2103 = vmatpush1.bf16.msra.mxu0 %v2100
    %2104 = vmatprep.subr.bf16.mxu0 0
    %2105 = vmatpush1.bf16.msra.mxu0 0
    %2106 = vmatprep.subr.bf16.mxu0 0
    %2107 = vmatpush1.bf16.msra.mxu0 0
    %2108 = vmatprep.subr.bf16.mxu0 0
    %2109 = vmatpush1.bf16.msra.mxu0 0
    %2110 = vmatprep.subr.bf16.mxu0 0
    %2111 = vmatpush1.bf16.msra.mxu0 0
    %2112 = vmatprep.subr.bf16.mxu0 0
    %2113 = vmatpush1.bf16.msra.mxu0 0
    %2114 = vmatprep.subr.bf16.mxu0 0
    %2115 = vmatpush1.bf16.msra.mxu0 0
    %2116 = vmatprep.subr.bf16.mxu0 0
    %2117 = vmatpush1.bf16.msra.mxu0 0
    %2118 = vmatprep.subr.bf16.mxu0 0
    %2119 = vmatpush1.bf16.msra.mxu0 0
    %2120 = vmatprep.subr.bf16.mxu0 0
    %2121 = vmatpush1.bf16.msra.mxu0 0
    %2122 = vmatprep.subr.bf16.mxu0 0
    %2123 = vmatpush1.bf16.msra.mxu0 0
    %2124 = vmatprep.subr.bf16.mxu0 0
    %2125 = vmatpush1.bf16.msra.mxu0 0
    %2126 = vmatprep.subr.bf16.mxu0 0
    %2127 = vmatpush1.bf16.msra.mxu0 0
    %2128 = vmatprep.subr.bf16.mxu0 0
    %2129 = vmatpush1.bf16.msra.mxu0 0
    %2130 = vmatprep.subr.bf16.mxu0 0
    %2131 = vmatpush1.bf16.msra.mxu0 0
    %2132 = vmatprep.subr.bf16.mxu0 0
    %2133 = vmatpush1.bf16.msra.mxu0 0
    %2134 = vmatprep.mubr.bf16.mxu0 0
    %2135 = vmatmul.mubr.bf16.gmra.mrb[0].mxu0 %v2097
    %v2136 = vpop.f32.mrb[0].mxu0
    %v2137 = vadd.f32 0.0, %v2136
    %v2138 = vpop.f32.mrb[0].mxu0
    %v2139 = vpop.f32.mrb[0].mxu0
    %v2140 = vpop.f32.mrb[0].mxu0
    %2141 = vdwg.mxu0
    %v2143 = vsel %vm654, %v1909, 0
    %v2146 = vsel %vm658, %v642, 0
    %2148 = vmatprep.subr.bf16.mxu0 0
    %2149 = vmatpush1.bf16.msra.mxu0 %v2146
    %2150 = vmatprep.subr.bf16.mxu0 0
    %2151 = vmatpush1.bf16.msra.mxu0 0
    %2152 = vmatprep.subr.bf16.mxu0 0
    %2153 = vmatpush1.bf16.msra.mxu0 0
    %2154 = vmatprep.subr.bf16.mxu0 0
    %2155 = vmatpush1.bf16.msra.mxu0 0
    %2156 = vmatprep.subr.bf16.mxu0 0
    %2157 = vmatpush1.bf16.msra.mxu0 0
    %2158 = vmatprep.subr.bf16.mxu0 0
    %2159 = vmatpush1.bf16.msra.mxu0 0
    %2160 = vmatprep.subr.bf16.mxu0 0
    %2161 = vmatpush1.bf16.msra.mxu0 0
    %2162 = vmatprep.subr.bf16.mxu0 0
    %2163 = vmatpush1.bf16.msra.mxu0 0
    %2164 = vmatprep.subr.bf16.mxu0 0
    %2165 = vmatpush1.bf16.msra.mxu0 0
    %2166 = vmatprep.subr.bf16.mxu0 0
    %2167 = vmatpush1.bf16.msra.mxu0 0
    %2168 = vmatprep.subr.bf16.mxu0 0
    %2169 = vmatpush1.bf16.msra.mxu0 0
    %2170 = vmatprep.subr.bf16.mxu0 0
    %2171 = vmatpush1.bf16.msra.mxu0 0
    %2172 = vmatprep.subr.bf16.mxu0 0
    %2173 = vmatpush1.bf16.msra.mxu0 0
    %2174 = vmatprep.subr.bf16.mxu0 0
    %2175 = vmatpush1.bf16.msra.mxu0 0
    %2176 = vmatprep.subr.bf16.mxu0 0
    %2177 = vmatpush1.bf16.msra.mxu0 0
    %2178 = vmatprep.subr.bf16.mxu0 0
    %2179 = vmatpush1.bf16.msra.mxu0 0
    %2180 = vmatprep.mubr.bf16.mxu0 0
    %2181 = vmatmul.mubr.bf16.gmra.mrb[0].mxu0 %v2143
    %v2182 = vpop.f32.mrb[0].mxu0
    %v2183 = vadd.f32 0.0, %v2182
    %v2184 = vpop.f32.mrb[0].mxu0
    %v2185 = vpop.f32.mrb[0].mxu0
    %v2186 = vpop.f32.mrb[0].mxu0
    %2187 = vdwg.mxu0
    %v2189 = vsel %vm654, %v1910, 0
    %v2192 = vsel %vm658, %v643, 0
    %2194 = vmatprep.subr.bf16.mxu0 0
    %2195 = vmatpush1.bf16.msra.mxu0 %v2192
    %2196 = vmatprep.subr.bf16.mxu0 0
    %2197 = vmatpush1.bf16.msra.mxu0 0
    %2198 = vmatprep.subr.bf16.mxu0 0
    %2199 = vmatpush1.bf16.msra.mxu0 0
    %2200 = vmatprep.subr.bf16.mxu0 0
    %2201 = vmatpush1.bf16.msra.mxu0 0
    %2202 = vmatprep.subr.bf16.mxu0 0
    %2203 = vmatpush1.bf16.msra.mxu0 0
    %2204 = vmatprep.subr.bf16.mxu0 0
    %2205 = vmatpush1.bf16.msra.mxu0 0
    %2206 = vmatprep.subr.bf16.mxu0 0
    %2207 = vmatpush1.bf16.msra.mxu0 0
    %2208 = vmatprep.subr.bf16.mxu0 0
    %2209 = vmatpush1.bf16.msra.mxu0 0
    %2210 = vmatprep.subr.bf16.mxu0 0
    %2211 = vmatpush1.bf16.msra.mxu0 0
    %2212 = vmatprep.subr.bf16.mxu0 0
    %2213 = vmatpush1.bf16.msra.mxu0 0
    %2214 = vmatprep.subr.bf16.mxu0 0
    %2215 = vmatpush1.bf16.msra.mxu0 0
    %2216 = vmatprep.subr.bf16.mxu0 0
    %2217 = vmatpush1.bf16.msra.mxu0 0
    %2218 = vmatprep.subr.bf16.mxu0 0
    %2219 = vmatpush1.bf16.msra.mxu0 0
    %2220 = vmatprep.subr.bf16.mxu0 0
    %2221 = vmatpush1.bf16.msra.mxu0 0
    %2222 = vmatprep.subr.bf16.mxu0 0
    %2223 = vmatpush1.bf16.msra.mxu0 0
    %2224 = vmatprep.subr.bf16.mxu0 0
    %2225 = vmatpush1.bf16.msra.mxu0 0
    %2226 = vmatprep.mubr.bf16.mxu0 0
    %2227 = vmatmul.mubr.bf16.gmra.mrb[0].mxu0 %v2189
    %v2228 = vpop.f32.mrb[0].mxu0
    %v2229 = vadd.f32 0.0, %v2228
    %v2230 = vpop.f32.mrb[0].mxu0
    %v2231 = vpop.f32.mrb[0].mxu0
    %v2232 = vpop.f32.mrb[0].mxu0
    %2233 = vdwg.mxu0
    %v2235 = vsel %vm654, %v1911, 0
    %v2238 = vsel %vm658, %v644, 0
    %2240 = vmatprep.subr.bf16.mxu0 0
    %2241 = vmatpush1.bf16.msra.mxu0 %v2238
    %2242 = vmatprep.subr.bf16.mxu0 0
    %2243 = vmatpush1.bf16.msra.mxu0 0
    %2244 = vmatprep.subr.bf16.mxu0 0
    %2245 = vmatpush1.bf16.msra.mxu0 0
    %2246 = vmatprep.subr.bf16.mxu0 0
    %2247 = vmatpush1.bf16.msra.mxu0 0
    %2248 = vmatprep.subr.bf16.mxu0 0
    %2249 = vmatpush1.bf16.msra.mxu0 0
    %2250 = vmatprep.subr.bf16.mxu0 0
    %2251 = vmatpush1.bf16.msra.mxu0 0
    %2252 = vmatprep.subr.bf16.mxu0 0
    %2253 = vmatpush1.bf16.msra.mxu0 0
    %2254 = vmatprep.subr.bf16.mxu0 0
    %2255 = vmatpush1.bf16.msra.mxu0 0
    %2256 = vmatprep.subr.bf16.mxu0 0
    %2257 = vmatpush1.bf16.msra.mxu0 0
    %2258 = vmatprep.subr.bf16.mxu0 0
    %2259 = vmatpush1.bf16.msra.mxu0 0
    %2260 = vmatprep.subr.bf16.mxu0 0
    %2261 = vmatpush1.bf16.msra.mxu0 0
    %2262 = vmatprep.subr.bf16.mxu0 0
    %2263 = vmatpush1.bf16.msra.mxu0 0
    %2264 = vmatprep.subr.bf16.mxu0 0
    %2265 = vmatpush1.bf16.msra.mxu0 0
    %2266 = vmatprep.subr.bf16.mxu0 0
    %2267 = vmatpush1.bf16.msra.mxu0 0
    %2268 = vmatprep.subr.bf16.mxu0 0
    %2269 = vmatpush1.bf16.msra.mxu0 0
    %2270 = vmatprep.subr.bf16.mxu0 0
    %2271 = vmatpush1.bf16.msra.mxu0 0
    %2272 = vmatprep.mubr.bf16.mxu0 0
    %2273 = vmatmul.mubr.bf16.gmra.mrb[0].mxu0 %v2235
    %v2274 = vpop.f32.mrb[0].mxu0
    %v2275 = vadd.f32 0.0, %v2274
    %v2276 = vpop.f32.mrb[0].mxu0
    %v2277 = vpop.f32.mrb[0].mxu0
    %v2278 = vpop.f32.mrb[0].mxu0
    %2279 = vdwg.mxu0
    %v2280 = vpack.c.bf16 %v1999, %v1953
    %v2281 = vpack.c.bf16 %v2091, %v2045
    %v2282 = vpack.c.bf16 %v2183, %v2137
    %v2283 = vpack.c.bf16 %v2275, %v2229
    %v2284 = vlaneseq
    %v2285 = vshrl.u32 %v2284, 7
    %v2286 = vsub.s32 4, %v2285
    %v2287 = vrot.slane %v35, %v2286
    %2288 = vxpose.xlu0.c.b16.start [1/8] %v385, 128
    %2289 = vxpose.xlu0.c.b16.cont [2/8] %v386, 128
    %2290 = vxpose.xlu0.c.b16.cont [3/8] %v387, 128
    %2291 = vxpose.xlu0.c.b16.cont [4/8] %v388, 128
    %2292 = vxpose.xlu0.c.b16.cont [5/8] 0, 128
    %2293 = vxpose.xlu0.c.b16.cont [6/8] 0, 128
    %2294 = vxpose.xlu0.c.b16.cont [7/8] 0, 128
    %2295 = vxpose.xlu0.c.b16.end [8/8] 0, 128
    %v2296 = vpop.trf.xlu0
    %v2297 = vpop.trf.xlu0
    %v2298 = vpop.trf.xlu0
    %v2299 = vpop.trf.xlu0
    %v2300 = vpop.trf.xlu0
    %v2301 = vpop.trf.xlu0
    %v2302 = vpop.trf.xlu0
    %v2303 = vpop.trf.xlu0
    %vm2304 = vcmask 523264
    %v2306 = vsel %vm2304, %v2296, 0
    %v2309 = vsel %vm2304, %v2297, 0
    %2311 = vmatprep.subr.bf16.mxu0 0
    %2312 = vmatpush1.bf16.msra.mxu0 %v2280
    %2313 = vmatprep.subr.bf16.mxu0 0
    %2314 = vmatpush1.bf16.msra.mxu0 %v2281
    %2315 = vmatprep.subr.bf16.mxu0 0
    %2316 = vmatpush1.bf16.msra.mxu0 %v2282
    %2317 = vmatprep.subr.bf16.mxu0 0
    %2318 = vmatpush1.bf16.msra.mxu0 %v2283
    %2319 = vmatprep.subr.bf16.mxu0 0
    %2320 = vmatpush1.bf16.msra.mxu0 0
    %2321 = vmatprep.subr.bf16.mxu0 0
    %2322 = vmatpush1.bf16.msra.mxu0 0
    %2323 = vmatprep.subr.bf16.mxu0 0
    %2324 = vmatpush1.bf16.msra.mxu0 0
    %2325 = vmatprep.subr.bf16.mxu0 0
    %2326 = vmatpush1.bf16.msra.mxu0 0
    %2327 = vmatprep.subr.bf16.mxu0 0
    %2328 = vmatpush1.bf16.msra.mxu0 0
    %2329 = vmatprep.subr.bf16.mxu0 0
    %2330 = vmatpush1.bf16.msra.mxu0 0
    %2331 = vmatprep.subr.bf16.mxu0 0
    %2332 = vmatpush1.bf16.msra.mxu0 0
    %2333 = vmatprep.subr.bf16.mxu0 0
    %2334 = vmatpush1.bf16.msra.mxu0 0
    %2335 = vmatprep.subr.bf16.mxu0 0
    %2336 = vmatpush1.bf16.msra.mxu0 0
    %2337 = vmatprep.subr.bf16.mxu0 0
    %2338 = vmatpush1.bf16.msra.mxu0 0
    %2339 = vmatprep.subr.bf16.mxu0 0
    %2340 = vmatpush1.bf16.msra.mxu0 0
    %2341 = vmatprep.subr.bf16.mxu0 0
    %2342 = vmatpush1.bf16.msra.mxu0 0
    %2343 = vmatprep.mubr.bf16.mxu0 0
    %2344 = vmatmul.mubr.bf16.gmra.mrb[0].mxu0 %v2306
    %v2345 = vpop.f32.mrb[0].mxu0
    %v2346 = vadd.f32 %v2287, %v2345
    %v2347 = vpop.f32.mrb[0].mxu0
    %v2348 = vpop.f32.mrb[0].mxu0
    %v2349 = vadd.f32 %v2287, %v2348
    %v2350 = vpop.f32.mrb[0].mxu0
    %2351 = vmatprep.mubr.bf16.mxu0 0
    %2352 = vmatmul.mubr.bf16.gmra.mrb[0].mxu0 %v2309
    %v2353 = vpop.f32.mrb[0].mxu0
    %v2354 = vadd.f32 %v2287, %v2353
    %v2355 = vpop.f32.mrb[0].mxu0
    %v2356 = vpop.f32.mrb[0].mxu0
    %v2357 = vadd.f32 %v2287, %v2356
    %v2358 = vpop.f32.mrb[0].mxu0
    %2359 = vdwg.mxu0
    %v2360 = vadd.f32 %v31, %v2346
    %v2361 = vadd.f32 %v32, %v2349
    %v2362 = vadd.f32 %v33, %v2354
    %v2363 = vadd.f32 %v34, %v2357
    %v2364 = vsel %vm36, %v2360, 0.0
    %2365 = vadd.xlane.f32.xlu0 %v2364
    %v2366 = vpop.xlane.xlu0 %2365
    %v2367 = vsel %vm36, %v2361, 0.0
    %2368 = vadd.xlane.f32.xlu0 %v2367
    %v2369 = vpop.xlane.xlu0 %2368
    %v2370 = vsel %vm36, %v2362, 0.0
    %2371 = vadd.xlane.f32.xlu0 %v2370
    %v2372 = vpop.xlane.xlu0 %2371
    %v2373 = vsel %vm36, %v2363, 0.0
    %2374 = vadd.xlane.f32.xlu0 %v2373
    %v2375 = vpop.xlane.xlu0 %2374
    %v2376 = vmul.f32 %v2366, %v49
    %v2377 = vmul.f32 %v2369, %v49
    %v2378 = vmul.f32 %v2372, %v49
    %v2379 = vmul.f32 %v2375, %v49
    %v2380 = vsub.f32 %v2360, %v2376
    %v2381 = vsub.f32 %v2361, %v2377
    %v2382 = vsub.f32 %v2362, %v2378
    %v2383 = vsub.f32 %v2363, %v2379
    %v2384 = vmul.f32 %v2380, %v2380
    %v2385 = vmul.f32 %v2381, %v2381
    %v2386 = vmul.f32 %v2382, %v2382
    %v2387 = vmul.f32 %v2383, %v2383
    %v2388 = vsel %vm36, %v2384, 0.0
    %2389 = vadd.xlane.f32.xlu0 %v2388
    %v2390 = vpop.xlane.xlu0 %2389
    %v2391 = vsel %vm36, %v2385, 0.0
    %2392 = vadd.xlane.f32.xlu0 %v2391
    %v2393 = vpop.xlane.xlu0 %2392
    %v2394 = vsel %vm36, %v2386, 0.0
    %2395 = vadd.xlane.f32.xlu0 %v2394
    %v2396 = vpop.xlane.xlu0 %2395
    %v2397 = vsel %vm36, %v2387, 0.0
    %2398 = vadd.xlane.f32.xlu0 %v2397
    %v2399 = vpop.xlane.xlu0 %2398
    %v2400 = vmul.f32 %v2390, %v49
    %v2401 = vmul.f32 %v2393, %v49
    %v2402 = vmul.f32 %v2396, %v49
    %v2403 = vmul.f32 %v2399, %v49
    %v2404 = vadd.f32 %v2400, 1e-05
    %v2405 = vadd.f32 %v2401, 1e-05
    %v2406 = vadd.f32 %v2402, 1e-05
    %v2407 = vadd.f32 %v2403, 1e-05
    %v2408 = vrsqrt.pop %v2404
    %v2409 = vrsqrt.pop %v2405
    %v2410 = vrsqrt.pop %v2406
    %v2411 = vrsqrt.pop %v2407
    %v2412 = vmul.f32 %v2380, %v2408
    %v2413 = vmul.f32 %v2381, %v2409
    %v2414 = vmul.f32 %v2382, %v2410
    %v2415 = vmul.f32 %v2383, %v2411
    %v2416 = vlaneseq
    %v2417 = vshrl.u32 %v2416, 7
    %v2418 = vsub.s32 2, %v2417
    %v2419 = vrot.slane %v35, %v2418
    %v2420 = vmul.f32 %v2412, %v2419
    %v2421 = vmul.f32 %v2413, %v2419
    %v2422 = vmul.f32 %v2414, %v2419
    %v2423 = vmul.f32 %v2415, %v2419
    %v2424 = vlaneseq
    %v2425 = vshrl.u32 %v2424, 7
    %v2426 = vsub.s32 3, %v2425
    %v2427 = vrot.slane %v35, %v2426
    %v2428 = vadd.f32 %v2420, %v2427
    %v2429 = vadd.f32 %v2421, %v2427
    %v2430 = vadd.f32 %v2422, %v2427
    %v2431 = vadd.f32 %v2423, %v2427
    %v2432 = vpack.c.bf16 %v2429, %v2428
    %v2433 = vpack.c.bf16 %v2431, %v2430
    %v2434 = vld [vmem:[%s5] sm:$0xf]
    %v2435 = vld [vmem:[%s5 + $0x4] sm:$0xf]
    %v2436 = vld [vmem:[%s5 + $0x8] sm:$0xf]
    %v2437 = vld [vmem:[%s5 + $0xc] sm:$0xf]
    %v2438 = vlaneseq
    %v2439 = vshrl.u32 %v2438, 7
    %v2440 = vsub.s32 5, %v2439
    %v2441 = vrot.slane %v35, %v2440
    %v2446 = vunpack.c.l.b16 %v2434
    %v2447 = vunpack.c.l.b16 %v2435
    %v2448 = vunpack.c.l.b16 %v2436
    %v2449 = vunpack.c.l.b16 %v2437
    %v2450 = vpack.c.b16 %v2447, %v2446
    %v2451 = vpack.c.b16 %v2449, %v2448
    %v2455 = vsel %vm36, %v2432, 0
    %v2458 = vsel %vm36, %v2433, 0
    %2460 = vmatprep.subr.bf16.mxu0 0
    %2461 = vmatpush1.bf16.msra.mxu0 %v2450
    %2462 = vmatprep.subr.bf16.mxu0 0
    %2463 = vmatpush1.bf16.msra.mxu0 %v2451
    %2464 = vmatprep.subr.bf16.mxu0 0
    %2465 = vmatpush1.bf16.msra.mxu0 0
    %2466 = vmatprep.subr.bf16.mxu0 0
    %2467 = vmatpush1.bf16.msra.mxu0 0
    %2468 = vmatprep.subr.bf16.mxu0 0
    %2469 = vmatpush1.bf16.msra.mxu0 0
    %2470 = vmatprep.subr.bf16.mxu0 0
    %2471 = vmatpush1.bf16.msra.mxu0 0
    %2472 = vmatprep.subr.bf16.mxu0 0
    %2473 = vmatpush1.bf16.msra.mxu0 0
    %2474 = vmatprep.subr.bf16.mxu0 0
    %2475 = vmatpush1.bf16.msra.mxu0 0
    %2476 = vmatprep.subr.bf16.mxu0 0
    %2477 = vmatpush1.bf16.msra.mxu0 0
    %2478 = vmatprep.subr.bf16.mxu0 0
    %2479 = vmatpush1.bf16.msra.mxu0 0
    %2480 = vmatprep.subr.bf16.mxu0 0
    %2481 = vmatpush1.bf16.msra.mxu0 0
    %2482 = vmatprep.subr.bf16.mxu0 0
    %2483 = vmatpush1.bf16.msra.mxu0 0
    %2484 = vmatprep.subr.bf16.mxu0 0
    %2485 = vmatpush1.bf16.msra.mxu0 0
    %2486 = vmatprep.subr.bf16.mxu0 0
    %2487 = vmatpush1.bf16.msra.mxu0 0
    %2488 = vmatprep.subr.bf16.mxu0 0
    %2489 = vmatpush1.bf16.msra.mxu0 0
    %2490 = vmatprep.subr.bf16.mxu0 0
    %2491 = vmatpush1.bf16.msra.mxu0 0
    %2492 = vmatprep.mubr.bf16.mxu0 0
    %2493 = vmatmul.mubr.bf16.gmra.mrb[0].mxu0 %v2455
    %v2494 = vpop.f32.mrb[0].mxu0
    %v2495 = vadd.f32 %v2441, %v2494
    %v2496 = vpop.f32.mrb[0].mxu0
    %v2497 = vpop.f32.mrb[0].mxu0
    %v2498 = vadd.f32 %v2441, %v2497
    %v2499 = vpop.f32.mrb[0].mxu0
    %2500 = vmatprep.mubr.bf16.mxu0 0
    %2501 = vmatmul.mubr.bf16.gmra.mrb[0].mxu0 %v2458
    %v2502 = vpop.f32.mrb[0].mxu0
    %v2503 = vadd.f32 %v2441, %v2502
    %v2504 = vpop.f32.mrb[0].mxu0
    %v2505 = vpop.f32.mrb[0].mxu0
    %v2506 = vadd.f32 %v2441, %v2505
    %v2507 = vpop.f32.mrb[0].mxu0
    %2508 = vdwg.mxu0
    %v2509 = vmul.f32 %v2495, 0.5
    %v2510 = vmul.f32 %v2498, 0.5
    %v2511 = vmul.f32 %v2503, 0.5
    %v2512 = vmul.f32 %v2506, 0.5
    %v2513 = vmul.f32 %v2495, 0.70710677
    %v2514 = vmul.f32 %v2498, 0.70710677
    %v2515 = vmul.f32 %v2503, 0.70710677
    %v2516 = vmul.f32 %v2506, 0.70710677
    %v2517 = verf.f32.pop %v2513
    %v2518 = verf.f32.pop %v2514
    %v2519 = verf.f32.pop %v2515
    %v2520 = verf.f32.pop %v2516
    %v2521 = vadd.f32 %v2517, 1.0
    %v2522 = vadd.f32 %v2518, 1.0
    %v2523 = vadd.f32 %v2519, 1.0
    %v2524 = vadd.f32 %v2520, 1.0
    %v2525 = vmul.f32 %v2509, %v2521
    %v2526 = vmul.f32 %v2510, %v2522
    %v2527 = vmul.f32 %v2511, %v2523
    %v2528 = vmul.f32 %v2512, %v2524
    %v2529 = vpack.c.bf16 %v2526, %v2525
    %v2530 = vpack.c.bf16 %v2528, %v2527
    %s2531 = scalar_lea.vmem %s5, 16
    %v2532 = vld [vmem:[%s2531] sm:$0xf]
    %v2533 = vld [vmem:[%s2531 + $0x4] sm:$0xf]
    %v2534 = vld [vmem:[%s2531 + $0x8] sm:$0xf]
    %v2535 = vld [vmem:[%s2531 + $0xc] sm:$0xf]
    %v2536 = vlaneseq
    %v2537 = vshrl.u32 %v2536, 7
    %v2538 = vsub.s32 6, %v2537
    %v2539 = vrot.slane %v35, %v2538
    %v2544 = vunpack.c.l.b16 %v2532
    %v2545 = vunpack.c.l.b16 %v2533
    %v2546 = vunpack.c.l.b16 %v2534
    %v2547 = vunpack.c.l.b16 %v2535
    %v2548 = vpack.c.b16 %v2545, %v2544
    %v2549 = vpack.c.b16 %v2547, %v2546
    %v2551 = vsel %vm2304, %v2529, 0
    %v2554 = vsel %vm2304, %v2530, 0
    %v2557 = vsel %vm2304, %v2548, 0
    %v2560 = vsel %vm2304, %v2549, 0
    %2562 = vmatprep.subr.bf16.mxu0 0
    %2563 = vmatpush1.bf16.xpose.msra.mxu0 %v2557
    %2564 = vmatprep.subr.bf16.mxu0 0
    %2565 = vmatpush1.bf16.xpose.msra.mxu0 %v2560
    %2566 = vmatprep.subr.bf16.mxu0 0
    %2567 = vmatpush1.bf16.xpose.msra.mxu0 0
    %2568 = vmatprep.subr.bf16.mxu0 0
    %2569 = vmatpush1.bf16.xpose.msra.mxu0 0
    %2570 = vmatprep.subr.bf16.mxu0 0
    %2571 = vmatpush1.bf16.xpose.msra.mxu0 0
    %2572 = vmatprep.subr.bf16.mxu0 0
    %2573 = vmatpush1.bf16.xpose.msra.mxu0 0
    %2574 = vmatprep.subr.bf16.mxu0 0
    %2575 = vmatpush1.bf16.xpose.msra.mxu0 0
    %2576 = vmatprep.subr.bf16.mxu0 0
    %2577 = vmatpush1.bf16.xpose.msra.mxu0 0
    %2578 = vmatprep.subr.bf16.mxu0 0
    %2579 = vmatpush1.bf16.xpose.msra.mxu0 0
    %2580 = vmatprep.subr.bf16.mxu0 0
    %2581 = vmatpush1.bf16.xpose.msra.mxu0 0
    %2582 = vmatprep.subr.bf16.mxu0 0
    %2583 = vmatpush1.bf16.xpose.msra.mxu0 0
    %2584 = vmatprep.subr.bf16.mxu0 0
    %2585 = vmatpush1.bf16.xpose.msra.mxu0 0
    %2586 = vmatprep.subr.bf16.mxu0 0
    %2587 = vmatpush1.bf16.xpose.msra.mxu0 0
    %2588 = vmatprep.subr.bf16.mxu0 0
    %2589 = vmatpush1.bf16.xpose.msra.mxu0 0
    %2590 = vmatprep.subr.bf16.mxu0 0
    %2591 = vmatpush1.bf16.xpose.msra.mxu0 0
    %2592 = vmatprep.subr.bf16.mxu0 0
    %2593 = vmatpush1.bf16.xpose.msra.mxu0 0
    %2594 = vmatprep.mubr.bf16.mxu0 0
    %2595 = vmatmul.mubr.bf16.gmra.mrb[0].mxu0 %v2551
    %v2596 = vpop.f32.mrb[0].mxu0
    %v2597 = vadd.f32 %v2539, %v2596
    %v2598 = vpop.f32.mrb[0].mxu0
    %v2599 = vpop.f32.mrb[0].mxu0
    %v2600 = vadd.f32 %v2539, %v2599
    %v2601 = vpop.f32.mrb[0].mxu0
    %2602 = vmatprep.mubr.bf16.mxu0 0
    %2603 = vmatmul.mubr.bf16.gmra.mrb[0].mxu0 %v2554
    %v2604 = vpop.f32.mrb[0].mxu0
    %v2605 = vadd.f32 %v2539, %v2604
    %v2606 = vpop.f32.mrb[0].mxu0
    %v2607 = vpop.f32.mrb[0].mxu0
    %v2608 = vadd.f32 %v2539, %v2607
    %v2609 = vpop.f32.mrb[0].mxu0
    %2610 = vdwg.mxu0
    %v2611 = vadd.f32 %v2360, %v2597
    %v2612 = vadd.f32 %v2361, %v2600
    %v2613 = vadd.f32 %v2362, %v2605
    %v2614 = vadd.f32 %v2363, %v2608
    %2615 = vst.msk [vmem:[#allocation2] sm:$0xff] %vm36, %v2611
    %2616 = vst.msk [vmem:[#allocation2 + $0x8] sm:$0xff] %vm36, %v2612
    %2617 = vst.msk [vmem:[#allocation2 + $0x10] sm:$0xff] %vm36, %v2613
    %2618 = vst.msk [vmem:[#allocation2 + $0x18] sm:$0xff] %vm36, %v2614
    %2619 = vst.msk [vmem:[%s8] sm:$0xff] %vm36, %v336
    %2620 = vst.msk [vmem:[%s8 + $0x8] sm:$0xff] %vm36, %v338
    %2621 = vst.msk [vmem:[%s8 + $0x10] sm:$0xff] %vm36, %v340
    %2622 = vst.msk [vmem:[%s8 + $0x18] sm:$0xff] %vm36, %v342
    %2623 = vst.msk [vmem:[%s9] sm:$0xff] %vm654, %v1497
    %2624 = vst.msk [vmem:[%s9 + $0x8] sm:$0xff] %vm654, %v1499
    %2625 = vst.msk [vmem:[%s9 + $0x10] sm:$0xff] %vm654, %v1501
    %2626 = vst.msk [vmem:[%s9 + $0x18] sm:$0xff] %vm654, %v1503
    %2627 = vst.msk [vmem:[%s9 + $0x20] sm:$0xff] %vm654, %v1505
    %2628 = vst.msk [vmem:[%s9 + $0x28] sm:$0xff] %vm654, %v1507
    %2629 = vst.msk [vmem:[%s9 + $0x30] sm:$0xff] %vm654, %v1509
    %2630 = vst.msk [vmem:[%s9 + $0x38] sm:$0xff] %vm654, %v1511
    // Predicated region
    $region30: #{block_forward.1} parent=1 // pred_check
      _
    $region31: #{block_forward.1} parent=1 // pred_check_branch
      %2632 = sbr.rel (0) target = $region33
    $region32: #{block_forward.1} parent=1 // pred_region
      %s2634 = ssub.s32 512, 512
      %2635 = vsyncadd [#allocation3], %s2634
      %s2636 = sshll.u32 [#allocation2], 4
      %s2637 = int_to_ptr.vmem [resolvable:$true] %s2636
      %2642 = dma.vmem_to_hbm [thread:$0]  %s2637, 512, %s7, [#allocation3], 128, 128, 8
    $region33: #{block_forward.1} parent=1 // pred_fallthru
      _
    // Predicated region
    $region34: #{block_forward.1} parent=1 // pred_check
      _
    $region35: #{block_forward.1} parent=1 // pred_check_branch
      %2644 = sbr.rel (0) target = $region37
    $region36: #{block_forward.1} parent=1 // pred_region
      _
    $region37: #{block_forward.1} parent=1 // pred_fallthru
      _
    // Predicated region
    $region38: #{block_forward.1} parent=1 // pred_check
      _
    $region39: #{block_forward.1} parent=1 // pred_check_branch
      %2646 = sbr.rel (0) target = $region41
    $region40: #{block_forward.1} parent=1 // pred_region
      _
    $region41: #{block_forward.1} parent=1 // pred_fallthru
      _
    // Predicated region
    $region42: #{block_forward.1} parent=1 // pred_check
      _
    $region43: #{block_forward.1} parent=1 // pred_check_branch
      %2648 = sbr.rel (0) target = $region45
    $region44: #{block_forward.1} parent=1 // pred_region
      %2649 = dma.done [#allocation3], 512
    $region45: #{block_forward.1} parent=1 // pred_fallthru
      _
    // Predicated region
    $region46: #{block_forward.1} parent=1 // pred_check
      _
    $region47: #{block_forward.1} parent=1 // pred_check_branch
      %2651 = sbr.rel (0) target = $region49
    $region48: #{block_forward.1} parent=1 // pred_region
      _
    $region49: #{block_forward.1} parent=1 // pred_fallthru
      _
    // Predicated region
    $region50: #{block_forward.1} parent=1 // pred_check
      _
    $region51: #{block_forward.1} parent=1 // pred_check_branch
      %2653 = sbr.rel (0) target = $region53
    $region52: #{block_forward.1} parent=1 // pred_region
      _
    $region53: #{block_forward.1} parent=1 // pred_fallthru
      _
    %2654 = vsyncpa [#allocation3], 1

</llo_original>
